<compile_context>
chip_gen: v5e
topology: v5e:2x2
jax: 0.10.0
libtpu: 0.0.40
codegen_flags: <defaults>
</compile_context>

<pallas_src>
import functools
import math

import jax
import jax.numpy as jnp
from jax.experimental import pallas as pl
from jax.experimental.pallas import tpu as pltpu

_TCHUNK = 32   # timesteps per grid step (amortizes per-grid-step overhead)
_UNROLL = 8    # partial unroll of the in-chunk recurrence


def _gate_affine_consts(hidden):
    # sigmoid(x) == 0.5*tanh(0.5*x) + 0.5; the 0.5 pre-scale is folded into the
    # i/f/o weight columns at init, so here: one tanh over all 4H lanes, then a
    # per-lane affine (0.5*t + 0.5 for i/f/o lanes, identity for g lanes).
    lane = jax.lax.broadcasted_iota(jnp.int32, (1, 4 * hidden), 1)
    is_g = jnp.logical_and(lane >= 2 * hidden, lane < 3 * hidden)
    scale = jnp.where(is_g, 1.0, 0.5).astype(jnp.float32)
    offset = jnp.where(is_g, 0.0, 0.5).astype(jnp.float32)
    return scale, offset


def _chain_step(h, c, gin, whh, valid, scale, offset, H):
    """One LSTM timestep for one direction.  h: bf16 (B,H), c: f32 (B,H)."""
    gates = gin + jnp.dot(h, whh, preferred_element_type=jnp.float32)   # (B,4H) f32
    act = jnp.tanh(gates) * scale + offset      # single full-vreg EUP push + VPU affine
    i_g = act[:, 0 * H:1 * H]
    f_g = act[:, 1 * H:2 * H]
    g_g = act[:, 2 * H:3 * H]
    o_g = act[:, 3 * H:4 * H]
    c_new = f_g * c + i_g * g_g
    h_new = o_g * jnp.tanh(c_new)
    c = jnp.where(valid, c_new, c)
    h = jnp.where(valid, h_new.astype(h.dtype), h)
    y = jnp.where(valid, h_new, 0.0)            # padded positions emit zeros
    return h, c, y


def _bilstm_chunk_kernel(len_ref, gf_ref, gb_ref, wf_ref, wb_ref,
                         yf_ref, yb_ref, hT_ref,
                         hf_s, cf_s, hb_s, cb_s, *, tchunk, hidden):
    """Fused fwd+bwd recurrence over one chunk of timesteps.  Grid: (nchunks,).

    gf_ref/gb_ref : (TCHUNK, B, 4H) bf16  precomputed x@W_ih+b (natural time order;
                                          the bwd chunk is selected reversed by its
                                          index_map and walked in reverse in-chunk)
    wf_ref/wb_ref : (H, 4H) bf16          hidden->gates weights (pre-transposed)
    yf_ref/yb_ref : (TCHUNK, B, H) f32    per-timestep outputs (natural time order)
    hT_ref        : (2, B, H) f32         final hidden state per direction
    h*_s / c*_s   : VMEM (B, H)           carried state across chunks
    """
    H = hidden
    k = pl.program_id(0)
    nchunks = pl.num_programs(0)

    @pl.when(k == 0)
    def _():
        hf_s[...] = jnp.zeros_like(hf_s)
        cf_s[...] = jnp.zeros_like(cf_s)
        hb_s[...] = jnp.zeros_like(hb_s)
        cb_s[...] = jnp.zeros_like(cb_s)

    lengths = len_ref[...]              # (B, 1) int32
    wf = wf_ref[...]                    # (H, 4H) bf16, loaded once per chunk
    wb = wb_ref[...]
    scale, offset = _gate_affine_consts(H)

    # Hoisted mask thresholds:
    #   forward  chunk covers t = k*tchunk + j           -> valid iff j <  rem_f
    #   backward chunk covers t = kb*tchunk + tchunk-1-j -> valid iff j >= thr_b
    rem_f = lengths - k * tchunk                          # (B, 1)
    kb = nchunks - 1 - k
    thr_b = kb * tchunk + tchunk - lengths                # (B, 1)

    def step(j, carry):
        h_f, c_f, h_b, c_b = carry
        # ---- forward chain ----
        valid_f = j < rem_f
        h_f, c_f, y_f = _chain_step(h_f, c_f, gf_ref[j], wf, valid_f, scale, offset, H)
        yf_ref[j] = y_f.astype(yf_ref.dtype)
        # ---- backward chain (independent -> interleaves with the forward one) ----
        jb = tchunk - 1 - j
        valid_b = j >= thr_b
        h_b, c_b, y_b = _chain_step(h_b, c_b, gb_ref[jb], wb, valid_b, scale, offset, H)
        yb_ref[jb] = y_b.astype(yb_ref.dtype)
        return h_f, c_f, h_b, c_b

    h_f, c_f, h_b, c_b = jax.lax.fori_loop(
        0, tchunk, step,
        (hf_s[...], cf_s[...], hb_s[...], cb_s[...]),
        unroll=min(_UNROLL, tchunk))

    # Spill carried state to VMEM scratch once per chunk.
    hf_s[...] = h_f
    cf_s[...] = c_f
    hb_s[...] = h_b
    cb_s[...] = c_b

    @pl.when(k == nchunks - 1)
    def _():
        hT_ref[0] = h_f.astype(hT_ref.dtype)
        hT_ref[1] = h_b.astype(hT_ref.dtype)


def _lstm_chunk_kernel_uni(len_ref, gf_ref, wf_ref, yf_ref, hT_ref,
                           hf_s, cf_s, *, tchunk, hidden):
    """Unidirectional variant (same structure, single chain)."""
    H = hidden
    k = pl.program_id(0)
    nchunks = pl.num_programs(0)

    @pl.when(k == 0)
    def _():
        hf_s[...] = jnp.zeros_like(hf_s)
        cf_s[...] = jnp.zeros_like(cf_s)

    lengths = len_ref[...]
    wf = wf_ref[...]
    scale, offset = _gate_affine_consts(H)
    rem_f = lengths - k * tchunk

    def step(j, carry):
        h_f, c_f = carry
        valid_f = j < rem_f
        h_f, c_f, y_f = _chain_step(h_f, c_f, gf_ref[j], wf, valid_f, scale, offset, H)
        yf_ref[j] = y_f.astype(yf_ref.dtype)
        return h_f, c_f

    h_f, c_f = jax.lax.fori_loop(0, tchunk, step, (hf_s[...], cf_s[...]),
                                 unroll=min(_UNROLL, tchunk))
    hf_s[...] = h_f
    cf_s[...] = c_f

    @pl.when(k == nchunks - 1)
    def _():
        hT_ref[...] = h_f.astype(hT_ref.dtype)


def _run_lstm_layer(gates, whh_t, lengths_b1, *, hidden, tchunk):
    """Runs the recurrent part of one layer.

    gates      : list (per direction) of (T_pad, B, 4H) bf16 in natural time order
    whh_t      : (num_dir, H, 4H) bf16
    lengths_b1 : (B, 1) int32
    Returns (ys list of (T_pad, B, H) f32, hTs list of (B, H) f32).
    """
    num_dir = len(gates)
    T_pad, B, G = gates[0].shape
    H = hidden
    nchunks = T_pad // tchunk

    # Explicit VMEM budget (double-buffered gates/y/weights per direction) so the
    # default scoped limit never throttles the pipeline; 32 MiB floor is safe on
    # v5e/v6e/v7x.
    bytes_needed = num_dir * (2 * tchunk * B * G * 2       # gates bf16, 2 buffers
                              + 2 * tchunk * B * H * 4     # y f32, 2 buffers
                              + 2 * H * G * 2              # W_hh bf16, 2 buffers
                              + B * H * (2 + 4)            # h/c scratch
                              + B * H * 4)                 # hT
    vmem_limit = int(max(2 * bytes_needed, 32 * 1024 * 1024))
    cparams = pltpu.CompilerParams(dimension_semantics=("arbitrary",),
                                   vmem_limit_bytes=vmem_limit)

    if num_dir == 2:
        kernel = functools.partial(_bilstm_chunk_kernel, tchunk=tchunk, hidden=H)
        grid_spec = pltpu.PrefetchScalarGridSpec(
            num_scalar_prefetch=0,
            grid=(nchunks,),
            in_specs=[
                pl.BlockSpec((B, 1), lambda k: (0, 0)),                         # lengths
                pl.BlockSpec((tchunk, B, G), lambda k: (k, 0, 0)),              # gates fwd
                pl.BlockSpec((tchunk, B, G), lambda k: (nchunks - 1 - k, 0, 0)),  # gates bwd (reversed)
                pl.BlockSpec((H, G), lambda k: (0, 0)),                         # W_hh fwd
                pl.BlockSpec((H, G), lambda k: (0, 0)),                         # W_hh bwd
            ],
            out_specs=[
                pl.BlockSpec((tchunk, B, H), lambda k: (k, 0, 0)),              # y fwd
                pl.BlockSpec((tchunk, B, H), lambda k: (nchunks - 1 - k, 0, 0)),  # y bwd
                pl.BlockSpec((2, B, H), lambda k: (0, 0, 0)),                   # hT
            ],
            scratch_shapes=[pltpu.VMEM((B, H), jnp.bfloat16),   # h fwd
                            pltpu.VMEM((B, H), jnp.float32),    # c fwd
                            pltpu.VMEM((B, H), jnp.bfloat16),   # h bwd
                            pltpu.VMEM((B, H), jnp.float32)],   # c bwd
        )
        y_f, y_b, hT = pl.pallas_call(
            kernel,
            grid_spec=grid_spec,
            out_shape=(jax.ShapeDtypeStruct((T_pad, B, H), jnp.float32),
                       jax.ShapeDtypeStruct((T_pad, B, H), jnp.float32),
                       jax.ShapeDtypeStruct((2, B, H), jnp.float32)),
            compiler_params=cparams,
        )(lengths_b1, gates[0], gates[1], whh_t[0], whh_t[1])
        return [y_f, y_b], [hT[0], hT[1]]

    kernel = functools.partial(_lstm_chunk_kernel_uni, tchunk=tchunk, hidden=H)
    grid_spec = pltpu.PrefetchScalarGridSpec(
        num_scalar_prefetch=0,
        grid=(nchunks,),
        in_specs=[
            pl.BlockSpec((B, 1), lambda k: (0, 0)),
            pl.BlockSpec((tchunk, B, G), lambda k: (k, 0, 0)),
            pl.BlockSpec((H, G), lambda k: (0, 0)),
        ],
        out_specs=[
            pl.BlockSpec((tchunk, B, H), lambda k: (k, 0, 0)),
            pl.BlockSpec((B, H), lambda k: (0, 0)),
        ],
        scratch_shapes=[pltpu.VMEM((B, H), jnp.bfloat16),
                        pltpu.VMEM((B, H), jnp.float32)],
    )
    y_f, hT = pl.pallas_call(
        kernel,
        grid_spec=grid_spec,
        out_shape=(jax.ShapeDtypeStruct((T_pad, B, H), jnp.float32),
                   jax.ShapeDtypeStruct((B, H), jnp.float32)),
        compiler_params=cparams,
    )(lengths_b1, gates[0], whh_t[0])
    return [y_f], [hT]


def init_lstm_params(key, input_size, hidden_size, num_layers, bidirectional):
    """nn.LSTM-style init (uniform +-1/sqrt(H)), stored pre-transposed/stacked.

    The 0.5 sigmoid pre-scale is folded into the i/f/o gate columns of W_ih, W_hh
    and the combined bias (PyTorch gate order [i, f, g, o]); weights kept in bf16.
    """
    num_dir = 2 if bidirectional else 1
    H = hidden_size
    bound = 1.0 / math.sqrt(H)
    gate_scale = jnp.concatenate([jnp.full((H,), 0.5), jnp.full((H,), 0.5),
                                  jnp.ones((H,)), jnp.full((H,), 0.5)]).astype(jnp.float32)
    params = []
    for layer in range(num_layers):
        layer_in = input_size if layer == 0 else H * num_dir
        wih, whh, bias = [], [], []
        for _ in range(num_dir):
            key, k1, k2, k3, k4 = jax.random.split(key, 5)
            w_ih = jax.random.uniform(k1, (4 * H, layer_in), jnp.float32, -bound, bound)
            w_hh = jax.random.uniform(k2, (4 * H, H), jnp.float32, -bound, bound)
            b_ih = jax.random.uniform(k3, (4 * H,), jnp.float32, -bound, bound)
            b_hh = jax.random.uniform(k4, (4 * H,), jnp.float32, -bound, bound)
            wih.append(w_ih.T * gate_scale[None, :])       # (layer_in, 4H), pre-scaled
            whh.append(w_hh.T * gate_scale[None, :])       # (H, 4H), pre-scaled
            bias.append((b_ih + b_hh) * gate_scale)        # (4H,), pre-scaled
        params.append(dict(
            wih_t=jnp.stack(wih).astype(jnp.bfloat16),     # (num_dir, layer_in, 4H)
            whh_t=jnp.stack(whh).astype(jnp.bfloat16),     # (num_dir, H, 4H)
            bias=jnp.stack(bias),                          # (num_dir, 4H) f32
        ))
    return params


def lstm_encoder_forward(inputs_btd, lengths, params, *, tchunk=_TCHUNK):
    """Equivalent of LSTMEncoder.forward(inputs, lengths, need_sort=False).

    Returns:
      outputs : (B, T, num_dir * H)         zero-padded past each sequence length
      ht_flat : (B, num_layers*num_dir*H)   == ht.permute(1,0,2).view(B,-1)
    """
    B, T, _ = inputs_btd.shape
    H = params[0]["whh_t"].shape[1]

    tchunk = max(1, min(tchunk, T))
    T_pad = -(-T // tchunk) * tchunk
    B_pad = -(-B // 8) * 8     # padded rows get length 0 so they stay at zero state

    x = jnp.transpose(inputs_btd.astype(jnp.float32), (1, 0, 2))          # (T, B, D)
    x = jnp.pad(x, ((0, T_pad - T), (0, B_pad - B), (0, 0)))
    lengths_b1 = jnp.pad(lengths.astype(jnp.int32), (0, B_pad - B)).reshape(B_pad, 1)

    hts = []
    for p in params:
        num_dir = p["whh_t"].shape[0]
        # Input projection hoisted out of the recurrence: one bf16 matmul over all
        # timesteps per direction (f32 accumulation), bias folded in, stored bf16.
        # No wrapper-side time flips: the kernel's index maps handle the backward
        # direction's reversal.
        gates = [
            (jnp.einsum("tbd,dg->tbg", x.astype(jnp.bfloat16), p["wih_t"][d],
                        preferred_element_type=jnp.float32)
             + p["bias"][d]).astype(jnp.bfloat16)
            for d in range(num_dir)
        ]
        ys, hTs = _run_lstm_layer(gates, p["whh_t"], lengths_b1,
                                  hidden=H, tchunk=tchunk)
        hts.extend(hTs)
        # TODO(synk): inter-layer dropout (train-mode stochastic) not applied;
        # eval-mode / dropout=0.0 semantics are exact.
        x = ys[0] if num_dir == 1 else jnp.concatenate(ys, axis=-1)       # (T_pad,B_pad,nd*H)

    outputs = jnp.transpose(x[:T, :B], (1, 0, 2))                         # (B, T, nd*H)
    # hts order: l0-fwd, l0-bwd, l1-fwd, l1-bwd == ht.permute(1,0,2).reshape(B,-1)
    ht_flat = jnp.concatenate(hts, axis=-1)[:B]                           # (B, L*nd*H)
    return outputs, ht_flat


def _reference_forward(inputs_btd, lengths, params):
    """Pure-JAX f32 reference (same math as the kernel) for validation."""
    B, T, _ = inputs_btd.shape
    H = params[0]["whh_t"].shape[1]
    x = inputs_btd.astype(jnp.float32)                     # (B, T, D)
    hts = []
    for p in params:
        num_dir = p["whh_t"].shape[0]
        outs = []
        for d in range(num_dir):
            wih = p["wih_t"][d].astype(jnp.float32)
            whh = p["whh_t"][d].astype(jnp.float32)
            b = p["bias"][d]
            h = jnp.zeros((B, H), jnp.float32)
            c = jnp.zeros((B, H), jnp.float32)
            ys = [None] * T
            order = range(T) if d == 0 else range(T - 1, -1, -1)
            for t in order:
                pre = x[:, t] @ wih + h @ whh + b
                a = jnp.tanh(pre)
                i_g = 0.5 * a[:, :H] + 0.5
                f_g = 0.5 * a[:, H:2 * H] + 0.5
                g_g = a[:, 2 * H:3 * H]
                o_g = 0.5 * a[:, 3 * H:] + 0.5
                c_n = f_g * c + i_g * g_g
                h_n = o_g * jnp.tanh(c_n)
                valid = (t < lengths)[:, None]
                c = jnp.where(valid, c_n, c)
                h = jnp.where(valid, h_n, h)
                ys[t] = jnp.where(valid, h_n, 0.0)
            outs.append(jnp.stack(ys, axis=1))             # (B, T, H)
            hts.append(h)
        x = jnp.concatenate(outs, axis=-1)
    return x, jnp.concatenate(hts, axis=-1)


if __name__ == "__main__":
    # Module config: input_size=16, hidden_size=32, num_layers=2,
    # dropout=0.0, batch_first=True, bidirectional=True
    B, T, D, H, L = 2, 8, 16, 32, 2
    key = jax.random.PRNGKey(0)
    k_in, k_p = jax.random.split(key)

    inputs = jax.random.normal(k_in, (B, T, D), jnp.float32)   # (batch, seq, feat)
    lengths = jnp.array([8, 5], dtype=jnp.int32)               # max(lengths) == T
    params = init_lstm_params(k_p, D, H, L, bidirectional=True)

    outputs, ht = jax.jit(lstm_encoder_forward)(inputs, lengths, params)
    jax.block_until_ready((outputs, ht))

    assert outputs.shape == (B, T, 2 * H), outputs.shape
    assert ht.shape == (B, L * 2 * H), ht.shape
    # Padded timesteps of the shorter sequence must be zero (unpack semantics).
    assert float(jnp.abs(outputs[1, 5:, :]).max()) == 0.0

    # Validate against a pure-JAX f32 reference (bf16 storage/matmuls in the
    # kernel path -> loose tolerance).
    ref_out, ref_ht = _reference_forward(inputs, lengths, params)
    assert jnp.allclose(outputs, ref_out, atol=5e-2), float(jnp.abs(outputs - ref_out).max())
    assert jnp.allclose(ht, ref_ht, atol=5e-2), float(jnp.abs(ht - ref_ht).max())

    print("KERNEL_OK")
</pallas_src>

<mosaic_0001>
module attributes {stable_mosaic.version = 11 : i64} {
  func.func @_bilstm_chunk_kernel(%arg0: i32, %arg1: memref<8x1xi32, #tpu.memory_space<vmem>>, %arg2: memref<8x8x128xbf16, #tpu.memory_space<vmem>>, %arg3: memref<8x8x128xbf16, #tpu.memory_space<vmem>>, %arg4: memref<32x128xbf16, #tpu.memory_space<vmem>>, %arg5: memref<32x128xbf16, #tpu.memory_space<vmem>>, %arg6: memref<8x8x32xf32, #tpu.memory_space<vmem>>, %arg7: memref<8x8x32xf32, #tpu.memory_space<vmem>>, %arg8: memref<2x8x32xf32, #tpu.memory_space<vmem>>, %arg9: memref<8x32xbf16, #tpu.memory_space<vmem>>, %arg10: memref<8x32xf32, #tpu.memory_space<vmem>>, %arg11: memref<8x32xbf16, #tpu.memory_space<vmem>>, %arg12: memref<8x32xf32, #tpu.memory_space<vmem>>) attributes {dimension_semantics = [#tpu.dimension_semantics<arbitrary>], iteration_bounds = array<i64: 1>, scalar_prefetch = 0 : i64, scratch_operands = 4 : i64, tpu.core_type = #tpu.core_type<tc>, window_params = [{pipeline_mode = #tpu.pipeline_mode<synchronous>, transform_indices = @transform_0, window_bounds = array<i64: 8, 1>}, {transform_indices = @transform_1, window_bounds = array<i64: 8, 8, 128>}, {transform_indices = @transform_2, window_bounds = array<i64: 8, 8, 128>}, {pipeline_mode = #tpu.pipeline_mode<synchronous>, transform_indices = @transform_3, window_bounds = array<i64: 32, 128>}, {pipeline_mode = #tpu.pipeline_mode<synchronous>, transform_indices = @transform_4, window_bounds = array<i64: 32, 128>}, {transform_indices = @transform_5, window_bounds = array<i64: 8, 8, 32>}, {transform_indices = @transform_6, window_bounds = array<i64: 8, 8, 32>}, {pipeline_mode = #tpu.pipeline_mode<synchronous>, transform_indices = @transform_7, window_bounds = array<i64: 2, 8, 32>}]} {
    %c0_i32 = arith.constant 0 : i32
    %0 = arith.cmpi eq, %arg0, %c0_i32 : i32
    %1 = arith.extui %0 : i1 to i32
    %c0_i32_0 = arith.constant 0 : i32
    %2 = arith.cmpi ne, %1, %c0_i32_0 : i32
    scf.if %2 {
      %cst_136 = arith.constant 0.000000e+00 : bf16
      %637 = vector.broadcast %cst_136 : bf16 to vector<8x32xbf16>
      %c0_137 = arith.constant 0 : index
      %c0_138 = arith.constant 0 : index
      %638 = vector.load %arg9[%c0_137, %c0_138] : memref<8x32xbf16, #tpu.memory_space<vmem>>, vector<8x32xbf16>
      tpu.vector_store %arg9[%c0_137, %c0_138], %637 {strides = array<i32>} : memref<8x32xbf16, #tpu.memory_space<vmem>>, vector<8x32xbf16>,
      %cst_139 = arith.constant 0.000000e+00 : f32
      %639 = vector.broadcast %cst_139 : f32 to vector<8x32xf32>
      %c0_140 = arith.constant 0 : index
      %c0_141 = arith.constant 0 : index
      %640 = vector.load %arg10[%c0_140, %c0_141] : memref<8x32xf32, #tpu.memory_space<vmem>>, vector<8x32xf32>
      tpu.vector_store %arg10[%c0_140, %c0_141], %639 {strides = array<i32>} : memref<8x32xf32, #tpu.memory_space<vmem>>, vector<8x32xf32>,
      %cst_142 = arith.constant 0.000000e+00 : bf16
      %641 = vector.broadcast %cst_142 : bf16 to vector<8x32xbf16>
      %c0_143 = arith.constant 0 : index
      %c0_144 = arith.constant 0 : index
      %642 = vector.load %arg11[%c0_143, %c0_144] : memref<8x32xbf16, #tpu.memory_space<vmem>>, vector<8x32xbf16>
      tpu.vector_store %arg11[%c0_143, %c0_144], %641 {strides = array<i32>} : memref<8x32xbf16, #tpu.memory_space<vmem>>, vector<8x32xbf16>,
      %cst_145 = arith.constant 0.000000e+00 : f32
      %643 = vector.broadcast %cst_145 : f32 to vector<8x32xf32>
      %c0_146 = arith.constant 0 : index
      %c0_147 = arith.constant 0 : index
      %644 = vector.load %arg12[%c0_146, %c0_147] : memref<8x32xf32, #tpu.memory_space<vmem>>, vector<8x32xf32>
      tpu.vector_store %arg12[%c0_146, %c0_147], %643 {strides = array<i32>} : memref<8x32xf32, #tpu.memory_space<vmem>>, vector<8x32xf32>,
    } else {
    }
    %c0 = arith.constant 0 : index
    %c0_1 = arith.constant 0 : index
    %3 = vector.load %arg1[%c0, %c0_1] : memref<8x1xi32, #tpu.memory_space<vmem>>, vector<8x1xi32>
    %c0_2 = arith.constant 0 : index
    %c0_3 = arith.constant 0 : index
    %4 = vector.load %arg4[%c0_2, %c0_3] : memref<32x128xbf16, #tpu.memory_space<vmem>>, vector<32x128xbf16>
    %c0_4 = arith.constant 0 : index
    %c0_5 = arith.constant 0 : index
    %5 = vector.load %arg5[%c0_4, %c0_5] : memref<32x128xbf16, #tpu.memory_space<vmem>>, vector<32x128xbf16>
    %6 = tpu.iota {dimensions = array<i32: 1>} : vector<1x128xi32>
    %c64_i32 = arith.constant 64 : i32
    %7 = vector.broadcast %c64_i32 : i32 to vector<1x128xi32>
    %8 = arith.cmpi sge, %6, %7 : vector<1x128xi32>
    %c96_i32 = arith.constant 96 : i32
    %9 = vector.broadcast %c96_i32 : i32 to vector<1x128xi32>
    %10 = arith.cmpi slt, %6, %9 : vector<1x128xi32>
    %11 = arith.andi %8, %10 : vector<1x128xi1>
    %cst = arith.constant 1.000000e+00 : f32
    %cst_6 = arith.constant 5.000000e-01 : f32
    %12 = vector.broadcast %cst : f32 to vector<1x128xf32>
    %13 = vector.broadcast %cst_6 : f32 to vector<1x128xf32>
    %14 = arith.select %11, %12, %13 : vector<1x128xi1>, vector<1x128xf32>
    %cst_7 = arith.constant 0.000000e+00 : f32
    %cst_8 = arith.constant 5.000000e-01 : f32
    %15 = vector.broadcast %cst_7 : f32 to vector<1x128xf32>
    %16 = vector.broadcast %cst_8 : f32 to vector<1x128xf32>
    %17 = arith.select %11, %15, %16 : vector<1x128xi1>, vector<1x128xf32>
    %c8_i32 = arith.constant 8 : i32
    %18 = arith.muli %arg0, %c8_i32 : i32
    %19 = vector.broadcast %18 : i32 to vector<8x1xi32>
    %20 = arith.subi %3, %19 : vector<8x1xi32>
    %c0_i32_9 = arith.constant 0 : i32
    %21 = arith.subi %c0_i32_9, %arg0 : i32
    %c8_i32_10 = arith.constant 8 : i32
    %22 = arith.muli %21, %c8_i32_10 : i32
    %c8_i32_11 = arith.constant 8 : i32
    %23 = arith.addi %22, %c8_i32_11 : i32
    %24 = vector.broadcast %23 : i32 to vector<8x1xi32>
    %25 = arith.subi %24, %3 : vector<8x1xi32>
    %c0_12 = arith.constant 0 : index
    %c0_13 = arith.constant 0 : index
    %26 = vector.load %arg9[%c0_12, %c0_13] : memref<8x32xbf16, #tpu.memory_space<vmem>>, vector<8x32xbf16>
    %c0_14 = arith.constant 0 : index
    %c0_15 = arith.constant 0 : index
    %27 = vector.load %arg10[%c0_14, %c0_15] : memref<8x32xf32, #tpu.memory_space<vmem>>, vector<8x32xf32>
    %c0_16 = arith.constant 0 : index
    %c0_17 = arith.constant 0 : index
    %28 = vector.load %arg11[%c0_16, %c0_17] : memref<8x32xbf16, #tpu.memory_space<vmem>>, vector<8x32xbf16>
    %c0_18 = arith.constant 0 : index
    %c0_19 = arith.constant 0 : index
    %29 = vector.load %arg12[%c0_18, %c0_19] : memref<8x32xf32, #tpu.memory_space<vmem>>, vector<8x32xf32>
    %c0_i32_20 = arith.constant 0 : i32
    %30 = vector.broadcast %c0_i32_20 : i32 to vector<8x1xi32>
    %31 = arith.cmpi slt, %30, %20 : vector<8x1xi32>
    %32 = arith.index_cast %c0_i32_20 : i32 to index
    %c0_21 = arith.constant 0 : index
    %c0_22 = arith.constant 0 : index
    %33 = vector.load %arg2[%32, %c0_21, %c0_22] : memref<8x8x128xbf16, #tpu.memory_space<vmem>>, vector<1x8x128xbf16>
    %34 = vector.shape_cast %33 : vector<1x8x128xbf16> to vector<8x128xbf16>
    %cst_23 = arith.constant dense<0.000000e+00> : vector<8x128xf32>
    %35 = tpu.matmul %26, %4, %cst_23 {dimension_numbers = #tpu.dot_dimension_numbers<[1], [0], [0], [1], [0, 0, 1, 1], [], []>} : vector<8x32xbf16>, vector<32x128xbf16>, vector<8x128xf32> -> vector<8x128xf32>
    %36 = arith.extf %34 : vector<8x128xbf16> to vector<8x128xf32>
    %37 = arith.addf %36, %35 : vector<8x128xf32>
    %38 = math.tanh %37 : vector<8x128xf32>
    %39 = vector.broadcast %14 : vector<1x128xf32> to vector<8x128xf32>
    %40 = arith.mulf %38, %39 : vector<8x128xf32>
    %41 = vector.broadcast %17 : vector<1x128xf32> to vector<8x128xf32>
    %42 = arith.addf %40, %41 : vector<8x128xf32>
    %43 = vector.extract_strided_slice %42 {offsets = [0, 0], sizes = [8, 32], strides = [1, 1]} : vector<8x128xf32> to vector<8x32xf32>
    %44 = vector.extract_strided_slice %42 {offsets = [0, 32], sizes = [8, 32], strides = [1, 1]} : vector<8x128xf32> to vector<8x32xf32>
    %45 = vector.extract_strided_slice %42 {offsets = [0, 64], sizes = [8, 32], strides = [1, 1]} : vector<8x128xf32> to vector<8x32xf32>
    %46 = vector.extract_strided_slice %42 {offsets = [0, 96], sizes = [8, 32], strides = [1, 1]} : vector<8x128xf32> to vector<8x32xf32>
    %47 = arith.mulf %44, %27 : vector<8x32xf32>
    %48 = arith.mulf %43, %45 : vector<8x32xf32>
    %49 = arith.addf %47, %48 : vector<8x32xf32>
    %50 = math.tanh %49 : vector<8x32xf32>
    %51 = arith.mulf %46, %50 : vector<8x32xf32>
    %52 = vector.shape_cast %31 : vector<8x1xi1> to vector<8x1xi1>
    %53 = vector.broadcast %52 : vector<8x1xi1> to vector<8x32xi1>
    %54 = arith.select %53, %49, %27 : vector<8x32xi1>, vector<8x32xf32>
    %55 = arith.truncf %51 : vector<8x32xf32> to vector<8x32xbf16>
    %56 = vector.shape_cast %31 : vector<8x1xi1> to vector<8x1xi1>
    %57 = vector.broadcast %56 : vector<8x1xi1> to vector<8x32xi1>
    %58 = arith.select %57, %55, %26 : vector<8x32xi1>, vector<8x32xbf16>
    %cst_24 = arith.constant 0.000000e+00 : f32
    %59 = vector.shape_cast %31 : vector<8x1xi1> to vector<8x1xi1>
    %60 = vector.broadcast %59 : vector<8x1xi1> to vector<8x32xi1>
    %61 = vector.broadcast %cst_24 : f32 to vector<8x32xf32>
    %62 = arith.select %60, %51, %61 : vector<8x32xi1>, vector<8x32xf32>
    %63 = arith.index_cast %c0_i32_20 : i32 to index
    %c0_25 = arith.constant 0 : index
    %c0_26 = arith.constant 0 : index
    %64 = vector.load %arg6[%63, %c0_25, %c0_26] : memref<8x8x32xf32, #tpu.memory_space<vmem>>, vector<1x8x32xf32>
    %65 = vector.shape_cast %64 : vector<1x8x32xf32> to vector<8x32xf32>
    %66 = vector.shape_cast %62 : vector<8x32xf32> to vector<1x8x32xf32>
    tpu.vector_store %arg6[%63, %c0_25, %c0_26], %66 {strides = array<i32>} : memref<8x8x32xf32, #tpu.memory_space<vmem>>, vector<1x8x32xf32>,
    %c7_i32 = arith.constant 7 : i32
    %67 = arith.subi %c7_i32, %c0_i32_20 : i32
    %68 = vector.broadcast %c0_i32_20 : i32 to vector<8x1xi32>
    %69 = arith.cmpi sge, %68, %25 : vector<8x1xi32>
    %70 = arith.index_cast %67 : i32 to index
    %c0_27 = arith.constant 0 : index
    %c0_28 = arith.constant 0 : index
    %71 = vector.load %arg3[%70, %c0_27, %c0_28] : memref<8x8x128xbf16, #tpu.memory_space<vmem>>, vector<1x8x128xbf16>
    %72 = vector.shape_cast %71 : vector<1x8x128xbf16> to vector<8x128xbf16>
    %cst_29 = arith.constant dense<0.000000e+00> : vector<8x128xf32>
    %73 = tpu.matmul %28, %5, %cst_29 {dimension_numbers = #tpu.dot_dimension_numbers<[1], [0], [0], [1], [0, 0, 1, 1], [], []>} : vector<8x32xbf16>, vector<32x128xbf16>, vector<8x128xf32> -> vector<8x128xf32>
    %74 = arith.extf %72 : vector<8x128xbf16> to vector<8x128xf32>
    %75 = arith.addf %74, %73 : vector<8x128xf32>
    %76 = math.tanh %75 : vector<8x128xf32>
    %77 = vector.broadcast %14 : vector<1x128xf32> to vector<8x128xf32>
    %78 = arith.mulf %76, %77 : vector<8x128xf32>
    %79 = vector.broadcast %17 : vector<1x128xf32> to vector<8x128xf32>
    %80 = arith.addf %78, %79 : vector<8x128xf32>
    %81 = vector.extract_strided_slice %80 {offsets = [0, 0], sizes = [8, 32], strides = [1, 1]} : vector<8x128xf32> to vector<8x32xf32>
    %82 = vector.extract_strided_slice %80 {offsets = [0, 32], sizes = [8, 32], strides = [1, 1]} : vector<8x128xf32> to vector<8x32xf32>
    %83 = vector.extract_strided_slice %80 {offsets = [0, 64], sizes = [8, 32], strides = [1, 1]} : vector<8x128xf32> to vector<8x32xf32>
    %84 = vector.extract_strided_slice %80 {offsets = [0, 96], sizes = [8, 32], strides = [1, 1]} : vector<8x128xf32> to vector<8x32xf32>
    %85 = arith.mulf %82, %29 : vector<8x32xf32>
    %86 = arith.mulf %81, %83 : vector<8x32xf32>
    %87 = arith.addf %85, %86 : vector<8x32xf32>
    %88 = math.tanh %87 : vector<8x32xf32>
    %89 = arith.mulf %84, %88 : vector<8x32xf32>
    %90 = vector.shape_cast %69 : vector<8x1xi1> to vector<8x1xi1>
    %91 = vector.broadcast %90 : vector<8x1xi1> to vector<8x32xi1>
    %92 = arith.select %91, %87, %29 : vector<8x32xi1>, vector<8x32xf32>
    %93 = arith.truncf %89 : vector<8x32xf32> to vector<8x32xbf16>
    %94 = vector.shape_cast %69 : vector<8x1xi1> to vector<8x1xi1>
    %95 = vector.broadcast %94 : vector<8x1xi1> to vector<8x32xi1>
    %96 = arith.select %95, %93, %28 : vector<8x32xi1>, vector<8x32xbf16>
    %cst_30 = arith.constant 0.000000e+00 : f32
    %97 = vector.shape_cast %69 : vector<8x1xi1> to vector<8x1xi1>
    %98 = vector.broadcast %97 : vector<8x1xi1> to vector<8x32xi1>
    %99 = vector.broadcast %cst_30 : f32 to vector<8x32xf32>
    %100 = arith.select %98, %89, %99 : vector<8x32xi1>, vector<8x32xf32>
    %101 = arith.index_cast %67 : i32 to index
    %c0_31 = arith.constant 0 : index
    %c0_32 = arith.constant 0 : index
    %102 = vector.load %arg7[%101, %c0_31, %c0_32] : memref<8x8x32xf32, #tpu.memory_space<vmem>>, vector<1x8x32xf32>
    %103 = vector.shape_cast %102 : vector<1x8x32xf32> to vector<8x32xf32>
    %104 = vector.shape_cast %100 : vector<8x32xf32> to vector<1x8x32xf32>
    tpu.vector_store %arg7[%101, %c0_31, %c0_32], %104 {strides = array<i32>} : memref<8x8x32xf32, #tpu.memory_space<vmem>>, vector<1x8x32xf32>,
    %c1_i32 = arith.constant 1 : i32
    %105 = vector.broadcast %c1_i32 : i32 to vector<8x1xi32>
    %106 = arith.cmpi slt, %105, %20 : vector<8x1xi32>
    %107 = arith.index_cast %c1_i32 : i32 to index
    %c0_33 = arith.constant 0 : index
    %c0_34 = arith.constant 0 : index
    %108 = vector.load %arg2[%107, %c0_33, %c0_34] : memref<8x8x128xbf16, #tpu.memory_space<vmem>>, vector<1x8x128xbf16>
    %109 = vector.shape_cast %108 : vector<1x8x128xbf16> to vector<8x128xbf16>
    %cst_35 = arith.constant dense<0.000000e+00> : vector<8x128xf32>
    %110 = tpu.matmul %58, %4, %cst_35 {dimension_numbers = #tpu.dot_dimension_numbers<[1], [0], [0], [1], [0, 0, 1, 1], [], []>} : vector<8x32xbf16>, vector<32x128xbf16>, vector<8x128xf32> -> vector<8x128xf32>
    %111 = arith.extf %109 : vector<8x128xbf16> to vector<8x128xf32>
    %112 = arith.addf %111, %110 : vector<8x128xf32>
    %113 = math.tanh %112 : vector<8x128xf32>
    %114 = vector.broadcast %14 : vector<1x128xf32> to vector<8x128xf32>
    %115 = arith.mulf %113, %114 : vector<8x128xf32>
    %116 = vector.broadcast %17 : vector<1x128xf32> to vector<8x128xf32>
    %117 = arith.addf %115, %116 : vector<8x128xf32>
    %118 = vector.extract_strided_slice %117 {offsets = [0, 0], sizes = [8, 32], strides = [1, 1]} : vector<8x128xf32> to vector<8x32xf32>
    %119 = vector.extract_strided_slice %117 {offsets = [0, 32], sizes = [8, 32], strides = [1, 1]} : vector<8x128xf32> to vector<8x32xf32>
    %120 = vector.extract_strided_slice %117 {offsets = [0, 64], sizes = [8, 32], strides = [1, 1]} : vector<8x128xf32> to vector<8x32xf32>
    %121 = vector.extract_strided_slice %117 {offsets = [0, 96], sizes = [8, 32], strides = [1, 1]} : vector<8x128xf32> to vector<8x32xf32>
    %122 = arith.mulf %119, %54 : vector<8x32xf32>
    %123 = arith.mulf %118, %120 : vector<8x32xf32>
    %124 = arith.addf %122, %123 : vector<8x32xf32>
    %125 = math.tanh %124 : vector<8x32xf32>
    %126 = arith.mulf %121, %125 : vector<8x32xf32>
    %127 = vector.shape_cast %106 : vector<8x1xi1> to vector<8x1xi1>
    %128 = vector.broadcast %127 : vector<8x1xi1> to vector<8x32xi1>
    %129 = arith.select %128, %124, %54 : vector<8x32xi1>, vector<8x32xf32>
    %130 = arith.truncf %126 : vector<8x32xf32> to vector<8x32xbf16>
    %131 = vector.shape_cast %106 : vector<8x1xi1> to vector<8x1xi1>
    %132 = vector.broadcast %131 : vector<8x1xi1> to vector<8x32xi1>
    %133 = arith.select %132, %130, %58 : vector<8x32xi1>, vector<8x32xbf16>
    %cst_36 = arith.constant 0.000000e+00 : f32
    %134 = vector.shape_cast %106 : vector<8x1xi1> to vector<8x1xi1>
    %135 = vector.broadcast %134 : vector<8x1xi1> to vector<8x32xi1>
    %136 = vector.broadcast %cst_36 : f32 to vector<8x32xf32>
    %137 = arith.select %135, %126, %136 : vector<8x32xi1>, vector<8x32xf32>
    %138 = arith.index_cast %c1_i32 : i32 to index
    %c0_37 = arith.constant 0 : index
    %c0_38 = arith.constant 0 : index
    %139 = vector.load %arg6[%138, %c0_37, %c0_38] : memref<8x8x32xf32, #tpu.memory_space<vmem>>, vector<1x8x32xf32>
    %140 = vector.shape_cast %139 : vector<1x8x32xf32> to vector<8x32xf32>
    %141 = vector.shape_cast %137 : vector<8x32xf32> to vector<1x8x32xf32>
    tpu.vector_store %arg6[%138, %c0_37, %c0_38], %141 {strides = array<i32>} : memref<8x8x32xf32, #tpu.memory_space<vmem>>, vector<1x8x32xf32>,
    %c7_i32_39 = arith.constant 7 : i32
    %142 = arith.subi %c7_i32_39, %c1_i32 : i32
    %143 = vector.broadcast %c1_i32 : i32 to vector<8x1xi32>
    %144 = arith.cmpi sge, %143, %25 : vector<8x1xi32>
    %145 = arith.index_cast %142 : i32 to index
    %c0_40 = arith.constant 0 : index
    %c0_41 = arith.constant 0 : index
    %146 = vector.load %arg3[%145, %c0_40, %c0_41] : memref<8x8x128xbf16, #tpu.memory_space<vmem>>, vector<1x8x128xbf16>
    %147 = vector.shape_cast %146 : vector<1x8x128xbf16> to vector<8x128xbf16>
    %cst_42 = arith.constant dense<0.000000e+00> : vector<8x128xf32>
    %148 = tpu.matmul %96, %5, %cst_42 {dimension_numbers = #tpu.dot_dimension_numbers<[1], [0], [0], [1], [0, 0, 1, 1], [], []>} : vector<8x32xbf16>, vector<32x128xbf16>, vector<8x128xf32> -> vector<8x128xf32>
    %149 = arith.extf %147 : vector<8x128xbf16> to vector<8x128xf32>
    %150 = arith.addf %149, %148 : vector<8x128xf32>
    %151 = math.tanh %150 : vector<8x128xf32>
    %152 = vector.broadcast %14 : vector<1x128xf32> to vector<8x128xf32>
    %153 = arith.mulf %151, %152 : vector<8x128xf32>
    %154 = vector.broadcast %17 : vector<1x128xf32> to vector<8x128xf32>
    %155 = arith.addf %153, %154 : vector<8x128xf32>
    %156 = vector.extract_strided_slice %155 {offsets = [0, 0], sizes = [8, 32], strides = [1, 1]} : vector<8x128xf32> to vector<8x32xf32>
    %157 = vector.extract_strided_slice %155 {offsets = [0, 32], sizes = [8, 32], strides = [1, 1]} : vector<8x128xf32> to vector<8x32xf32>
    %158 = vector.extract_strided_slice %155 {offsets = [0, 64], sizes = [8, 32], strides = [1, 1]} : vector<8x128xf32> to vector<8x32xf32>
    %159 = vector.extract_strided_slice %155 {offsets = [0, 96], sizes = [8, 32], strides = [1, 1]} : vector<8x128xf32> to vector<8x32xf32>
    %160 = arith.mulf %157, %92 : vector<8x32xf32>
    %161 = arith.mulf %156, %158 : vector<8x32xf32>
    %162 = arith.addf %160, %161 : vector<8x32xf32>
    %163 = math.tanh %162 : vector<8x32xf32>
    %164 = arith.mulf %159, %163 : vector<8x32xf32>
    %165 = vector.shape_cast %144 : vector<8x1xi1> to vector<8x1xi1>
    %166 = vector.broadcast %165 : vector<8x1xi1> to vector<8x32xi1>
    %167 = arith.select %166, %162, %92 : vector<8x32xi1>, vector<8x32xf32>
    %168 = arith.truncf %164 : vector<8x32xf32> to vector<8x32xbf16>
    %169 = vector.shape_cast %144 : vector<8x1xi1> to vector<8x1xi1>
    %170 = vector.broadcast %169 : vector<8x1xi1> to vector<8x32xi1>
    %171 = arith.select %170, %168, %96 : vector<8x32xi1>, vector<8x32xbf16>
    %cst_43 = arith.constant 0.000000e+00 : f32
    %172 = vector.shape_cast %144 : vector<8x1xi1> to vector<8x1xi1>
    %173 = vector.broadcast %172 : vector<8x1xi1> to vector<8x32xi1>
    %174 = vector.broadcast %cst_43 : f32 to vector<8x32xf32>
    %175 = arith.select %173, %164, %174 : vector<8x32xi1>, vector<8x32xf32>
    %176 = arith.index_cast %142 : i32 to index
    %c0_44 = arith.constant 0 : index
    %c0_45 = arith.constant 0 : index
    %177 = vector.load %arg7[%176, %c0_44, %c0_45] : memref<8x8x32xf32, #tpu.memory_space<vmem>>, vector<1x8x32xf32>
    %178 = vector.shape_cast %177 : vector<1x8x32xf32> to vector<8x32xf32>
    %179 = vector.shape_cast %175 : vector<8x32xf32> to vector<1x8x32xf32>
    tpu.vector_store %arg7[%176, %c0_44, %c0_45], %179 {strides = array<i32>} : memref<8x8x32xf32, #tpu.memory_space<vmem>>, vector<1x8x32xf32>,
    %c2_i32 = arith.constant 2 : i32
    %180 = vector.broadcast %c2_i32 : i32 to vector<8x1xi32>
    %181 = arith.cmpi slt, %180, %20 : vector<8x1xi32>
    %182 = arith.index_cast %c2_i32 : i32 to index
    %c0_46 = arith.constant 0 : index
    %c0_47 = arith.constant 0 : index
    %183 = vector.load %arg2[%182, %c0_46, %c0_47] : memref<8x8x128xbf16, #tpu.memory_space<vmem>>, vector<1x8x128xbf16>
    %184 = vector.shape_cast %183 : vector<1x8x128xbf16> to vector<8x128xbf16>
    %cst_48 = arith.constant dense<0.000000e+00> : vector<8x128xf32>
    %185 = tpu.matmul %133, %4, %cst_48 {dimension_numbers = #tpu.dot_dimension_numbers<[1], [0], [0], [1], [0, 0, 1, 1], [], []>} : vector<8x32xbf16>, vector<32x128xbf16>, vector<8x128xf32> -> vector<8x128xf32>
    %186 = arith.extf %184 : vector<8x128xbf16> to vector<8x128xf32>
    %187 = arith.addf %186, %185 : vector<8x128xf32>
    %188 = math.tanh %187 : vector<8x128xf32>
    %189 = vector.broadcast %14 : vector<1x128xf32> to vector<8x128xf32>
    %190 = arith.mulf %188, %189 : vector<8x128xf32>
    %191 = vector.broadcast %17 : vector<1x128xf32> to vector<8x128xf32>
    %192 = arith.addf %190, %191 : vector<8x128xf32>
    %193 = vector.extract_strided_slice %192 {offsets = [0, 0], sizes = [8, 32], strides = [1, 1]} : vector<8x128xf32> to vector<8x32xf32>
    %194 = vector.extract_strided_slice %192 {offsets = [0, 32], sizes = [8, 32], strides = [1, 1]} : vector<8x128xf32> to vector<8x32xf32>
    %195 = vector.extract_strided_slice %192 {offsets = [0, 64], sizes = [8, 32], strides = [1, 1]} : vector<8x128xf32> to vector<8x32xf32>
    %196 = vector.extract_strided_slice %192 {offsets = [0, 96], sizes = [8, 32], strides = [1, 1]} : vector<8x128xf32> to vector<8x32xf32>
    %197 = arith.mulf %194, %129 : vector<8x32xf32>
    %198 = arith.mulf %193, %195 : vector<8x32xf32>
    %199 = arith.addf %197, %198 : vector<8x32xf32>
    %200 = math.tanh %199 : vector<8x32xf32>
    %201 = arith.mulf %196, %200 : vector<8x32xf32>
    %202 = vector.shape_cast %181 : vector<8x1xi1> to vector<8x1xi1>
    %203 = vector.broadcast %202 : vector<8x1xi1> to vector<8x32xi1>
    %204 = arith.select %203, %199, %129 : vector<8x32xi1>, vector<8x32xf32>
    %205 = arith.truncf %201 : vector<8x32xf32> to vector<8x32xbf16>
    %206 = vector.shape_cast %181 : vector<8x1xi1> to vector<8x1xi1>
    %207 = vector.broadcast %206 : vector<8x1xi1> to vector<8x32xi1>
    %208 = arith.select %207, %205, %133 : vector<8x32xi1>, vector<8x32xbf16>
    %cst_49 = arith.constant 0.000000e+00 : f32
    %209 = vector.shape_cast %181 : vector<8x1xi1> to vector<8x1xi1>
    %210 = vector.broadcast %209 : vector<8x1xi1> to vector<8x32xi1>
    %211 = vector.broadcast %cst_49 : f32 to vector<8x32xf32>
    %212 = arith.select %210, %201, %211 : vector<8x32xi1>, vector<8x32xf32>
    %213 = arith.index_cast %c2_i32 : i32 to index
    %c0_50 = arith.constant 0 : index
    %c0_51 = arith.constant 0 : index
    %214 = vector.load %arg6[%213, %c0_50, %c0_51] : memref<8x8x32xf32, #tpu.memory_space<vmem>>, vector<1x8x32xf32>
    %215 = vector.shape_cast %214 : vector<1x8x32xf32> to vector<8x32xf32>
    %216 = vector.shape_cast %212 : vector<8x32xf32> to vector<1x8x32xf32>
    tpu.vector_store %arg6[%213, %c0_50, %c0_51], %216 {strides = array<i32>} : memref<8x8x32xf32, #tpu.memory_space<vmem>>, vector<1x8x32xf32>,
    %c7_i32_52 = arith.constant 7 : i32
    %217 = arith.subi %c7_i32_52, %c2_i32 : i32
    %218 = vector.broadcast %c2_i32 : i32 to vector<8x1xi32>
    %219 = arith.cmpi sge, %218, %25 : vector<8x1xi32>
    %220 = arith.index_cast %217 : i32 to index
    %c0_53 = arith.constant 0 : index
    %c0_54 = arith.constant 0 : index
    %221 = vector.load %arg3[%220, %c0_53, %c0_54] : memref<8x8x128xbf16, #tpu.memory_space<vmem>>, vector<1x8x128xbf16>
    %222 = vector.shape_cast %221 : vector<1x8x128xbf16> to vector<8x128xbf16>
    %cst_55 = arith.constant dense<0.000000e+00> : vector<8x128xf32>
    %223 = tpu.matmul %171, %5, %cst_55 {dimension_numbers = #tpu.dot_dimension_numbers<[1], [0], [0], [1], [0, 0, 1, 1], [], []>} : vector<8x32xbf16>, vector<32x128xbf16>, vector<8x128xf32> -> vector<8x128xf32>
    %224 = arith.extf %222 : vector<8x128xbf16> to vector<8x128xf32>
    %225 = arith.addf %224, %223 : vector<8x128xf32>
    %226 = math.tanh %225 : vector<8x128xf32>
    %227 = vector.broadcast %14 : vector<1x128xf32> to vector<8x128xf32>
    %228 = arith.mulf %226, %227 : vector<8x128xf32>
    %229 = vector.broadcast %17 : vector<1x128xf32> to vector<8x128xf32>
    %230 = arith.addf %228, %229 : vector<8x128xf32>
    %231 = vector.extract_strided_slice %230 {offsets = [0, 0], sizes = [8, 32], strides = [1, 1]} : vector<8x128xf32> to vector<8x32xf32>
    %232 = vector.extract_strided_slice %230 {offsets = [0, 32], sizes = [8, 32], strides = [1, 1]} : vector<8x128xf32> to vector<8x32xf32>
    %233 = vector.extract_strided_slice %230 {offsets = [0, 64], sizes = [8, 32], strides = [1, 1]} : vector<8x128xf32> to vector<8x32xf32>
    %234 = vector.extract_strided_slice %230 {offsets = [0, 96], sizes = [8, 32], strides = [1, 1]} : vector<8x128xf32> to vector<8x32xf32>
    %235 = arith.mulf %232, %167 : vector<8x32xf32>
    %236 = arith.mulf %231, %233 : vector<8x32xf32>
    %237 = arith.addf %235, %236 : vector<8x32xf32>
    %238 = math.tanh %237 : vector<8x32xf32>
    %239 = arith.mulf %234, %238 : vector<8x32xf32>
    %240 = vector.shape_cast %219 : vector<8x1xi1> to vector<8x1xi1>
    %241 = vector.broadcast %240 : vector<8x1xi1> to vector<8x32xi1>
    %242 = arith.select %241, %237, %167 : vector<8x32xi1>, vector<8x32xf32>
    %243 = arith.truncf %239 : vector<8x32xf32> to vector<8x32xbf16>
    %244 = vector.shape_cast %219 : vector<8x1xi1> to vector<8x1xi1>
    %245 = vector.broadcast %244 : vector<8x1xi1> to vector<8x32xi1>
    %246 = arith.select %245, %243, %171 : vector<8x32xi1>, vector<8x32xbf16>
    %cst_56 = arith.constant 0.000000e+00 : f32
    %247 = vector.shape_cast %219 : vector<8x1xi1> to vector<8x1xi1>
    %248 = vector.broadcast %247 : vector<8x1xi1> to vector<8x32xi1>
    %249 = vector.broadcast %cst_56 : f32 to vector<8x32xf32>
    %250 = arith.select %248, %239, %249 : vector<8x32xi1>, vector<8x32xf32>
    %251 = arith.index_cast %217 : i32 to index
    %c0_57 = arith.constant 0 : index
    %c0_58 = arith.constant 0 : index
    %252 = vector.load %arg7[%251, %c0_57, %c0_58] : memref<8x8x32xf32, #tpu.memory_space<vmem>>, vector<1x8x32xf32>
    %253 = vector.shape_cast %252 : vector<1x8x32xf32> to vector<8x32xf32>
    %254 = vector.shape_cast %250 : vector<8x32xf32> to vector<1x8x32xf32>
    tpu.vector_store %arg7[%251, %c0_57, %c0_58], %254 {strides = array<i32>} : memref<8x8x32xf32, #tpu.memory_space<vmem>>, vector<1x8x32xf32>,
    %c3_i32 = arith.constant 3 : i32
    %255 = vector.broadcast %c3_i32 : i32 to vector<8x1xi32>
    %256 = arith.cmpi slt, %255, %20 : vector<8x1xi32>
    %257 = arith.index_cast %c3_i32 : i32 to index
    %c0_59 = arith.constant 0 : index
    %c0_60 = arith.constant 0 : index
    %258 = vector.load %arg2[%257, %c0_59, %c0_60] : memref<8x8x128xbf16, #tpu.memory_space<vmem>>, vector<1x8x128xbf16>
    %259 = vector.shape_cast %258 : vector<1x8x128xbf16> to vector<8x128xbf16>
    %cst_61 = arith.constant dense<0.000000e+00> : vector<8x128xf32>
    %260 = tpu.matmul %208, %4, %cst_61 {dimension_numbers = #tpu.dot_dimension_numbers<[1], [0], [0], [1], [0, 0, 1, 1], [], []>} : vector<8x32xbf16>, vector<32x128xbf16>, vector<8x128xf32> -> vector<8x128xf32>
    %261 = arith.extf %259 : vector<8x128xbf16> to vector<8x128xf32>
    %262 = arith.addf %261, %260 : vector<8x128xf32>
    %263 = math.tanh %262 : vector<8x128xf32>
    %264 = vector.broadcast %14 : vector<1x128xf32> to vector<8x128xf32>
    %265 = arith.mulf %263, %264 : vector<8x128xf32>
    %266 = vector.broadcast %17 : vector<1x128xf32> to vector<8x128xf32>
    %267 = arith.addf %265, %266 : vector<8x128xf32>
    %268 = vector.extract_strided_slice %267 {offsets = [0, 0], sizes = [8, 32], strides = [1, 1]} : vector<8x128xf32> to vector<8x32xf32>
    %269 = vector.extract_strided_slice %267 {offsets = [0, 32], sizes = [8, 32], strides = [1, 1]} : vector<8x128xf32> to vector<8x32xf32>
    %270 = vector.extract_strided_slice %267 {offsets = [0, 64], sizes = [8, 32], strides = [1, 1]} : vector<8x128xf32> to vector<8x32xf32>
    %271 = vector.extract_strided_slice %267 {offsets = [0, 96], sizes = [8, 32], strides = [1, 1]} : vector<8x128xf32> to vector<8x32xf32>
    %272 = arith.mulf %269, %204 : vector<8x32xf32>
    %273 = arith.mulf %268, %270 : vector<8x32xf32>
    %274 = arith.addf %272, %273 : vector<8x32xf32>
    %275 = math.tanh %274 : vector<8x32xf32>
    %276 = arith.mulf %271, %275 : vector<8x32xf32>
    %277 = vector.shape_cast %256 : vector<8x1xi1> to vector<8x1xi1>
    %278 = vector.broadcast %277 : vector<8x1xi1> to vector<8x32xi1>
    %279 = arith.select %278, %274, %204 : vector<8x32xi1>, vector<8x32xf32>
    %280 = arith.truncf %276 : vector<8x32xf32> to vector<8x32xbf16>
    %281 = vector.shape_cast %256 : vector<8x1xi1> to vector<8x1xi1>
    %282 = vector.broadcast %281 : vector<8x1xi1> to vector<8x32xi1>
    %283 = arith.select %282, %280, %208 : vector<8x32xi1>, vector<8x32xbf16>
    %cst_62 = arith.constant 0.000000e+00 : f32
    %284 = vector.shape_cast %256 : vector<8x1xi1> to vector<8x1xi1>
    %285 = vector.broadcast %284 : vector<8x1xi1> to vector<8x32xi1>
    %286 = vector.broadcast %cst_62 : f32 to vector<8x32xf32>
    %287 = arith.select %285, %276, %286 : vector<8x32xi1>, vector<8x32xf32>
    %288 = arith.index_cast %c3_i32 : i32 to index
    %c0_63 = arith.constant 0 : index
    %c0_64 = arith.constant 0 : index
    %289 = vector.load %arg6[%288, %c0_63, %c0_64] : memref<8x8x32xf32, #tpu.memory_space<vmem>>, vector<1x8x32xf32>
    %290 = vector.shape_cast %289 : vector<1x8x32xf32> to vector<8x32xf32>
    %291 = vector.shape_cast %287 : vector<8x32xf32> to vector<1x8x32xf32>
    tpu.vector_store %arg6[%288, %c0_63, %c0_64], %291 {strides = array<i32>} : memref<8x8x32xf32, #tpu.memory_space<vmem>>, vector<1x8x32xf32>,
    %c7_i32_65 = arith.constant 7 : i32
    %292 = arith.subi %c7_i32_65, %c3_i32 : i32
    %293 = vector.broadcast %c3_i32 : i32 to vector<8x1xi32>
    %294 = arith.cmpi sge, %293, %25 : vector<8x1xi32>
    %295 = arith.index_cast %292 : i32 to index
    %c0_66 = arith.constant 0 : index
    %c0_67 = arith.constant 0 : index
    %296 = vector.load %arg3[%295, %c0_66, %c0_67] : memref<8x8x128xbf16, #tpu.memory_space<vmem>>, vector<1x8x128xbf16>
    %297 = vector.shape_cast %296 : vector<1x8x128xbf16> to vector<8x128xbf16>
    %cst_68 = arith.constant dense<0.000000e+00> : vector<8x128xf32>
    %298 = tpu.matmul %246, %5, %cst_68 {dimension_numbers = #tpu.dot_dimension_numbers<[1], [0], [0], [1], [0, 0, 1, 1], [], []>} : vector<8x32xbf16>, vector<32x128xbf16>, vector<8x128xf32> -> vector<8x128xf32>
    %299 = arith.extf %297 : vector<8x128xbf16> to vector<8x128xf32>
    %300 = arith.addf %299, %298 : vector<8x128xf32>
    %301 = math.tanh %300 : vector<8x128xf32>
    %302 = vector.broadcast %14 : vector<1x128xf32> to vector<8x128xf32>
    %303 = arith.mulf %301, %302 : vector<8x128xf32>
    %304 = vector.broadcast %17 : vector<1x128xf32> to vector<8x128xf32>
    %305 = arith.addf %303, %304 : vector<8x128xf32>
    %306 = vector.extract_strided_slice %305 {offsets = [0, 0], sizes = [8, 32], strides = [1, 1]} : vector<8x128xf32> to vector<8x32xf32>
    %307 = vector.extract_strided_slice %305 {offsets = [0, 32], sizes = [8, 32], strides = [1, 1]} : vector<8x128xf32> to vector<8x32xf32>
    %308 = vector.extract_strided_slice %305 {offsets = [0, 64], sizes = [8, 32], strides = [1, 1]} : vector<8x128xf32> to vector<8x32xf32>
    %309 = vector.extract_strided_slice %305 {offsets = [0, 96], sizes = [8, 32], strides = [1, 1]} : vector<8x128xf32> to vector<8x32xf32>
    %310 = arith.mulf %307, %242 : vector<8x32xf32>
    %311 = arith.mulf %306, %308 : vector<8x32xf32>
    %312 = arith.addf %310, %311 : vector<8x32xf32>
    %313 = math.tanh %312 : vector<8x32xf32>
    %314 = arith.mulf %309, %313 : vector<8x32xf32>
    %315 = vector.shape_cast %294 : vector<8x1xi1> to vector<8x1xi1>
    %316 = vector.broadcast %315 : vector<8x1xi1> to vector<8x32xi1>
    %317 = arith.select %316, %312, %242 : vector<8x32xi1>, vector<8x32xf32>
    %318 = arith.truncf %314 : vector<8x32xf32> to vector<8x32xbf16>
    %319 = vector.shape_cast %294 : vector<8x1xi1> to vector<8x1xi1>
    %320 = vector.broadcast %319 : vector<8x1xi1> to vector<8x32xi1>
    %321 = arith.select %320, %318, %246 : vector<8x32xi1>, vector<8x32xbf16>
    %cst_69 = arith.constant 0.000000e+00 : f32
    %322 = vector.shape_cast %294 : vector<8x1xi1> to vector<8x1xi1>
    %323 = vector.broadcast %322 : vector<8x1xi1> to vector<8x32xi1>
    %324 = vector.broadcast %cst_69 : f32 to vector<8x32xf32>
    %325 = arith.select %323, %314, %324 : vector<8x32xi1>, vector<8x32xf32>
    %326 = arith.index_cast %292 : i32 to index
    %c0_70 = arith.constant 0 : index
    %c0_71 = arith.constant 0 : index
    %327 = vector.load %arg7[%326, %c0_70, %c0_71] : memref<8x8x32xf32, #tpu.memory_space<vmem>>, vector<1x8x32xf32>
    %328 = vector.shape_cast %327 : vector<1x8x32xf32> to vector<8x32xf32>
    %329 = vector.shape_cast %325 : vector<8x32xf32> to vector<1x8x32xf32>
    tpu.vector_store %arg7[%326, %c0_70, %c0_71], %329 {strides = array<i32>} : memref<8x8x32xf32, #tpu.memory_space<vmem>>, vector<1x8x32xf32>,
    %c4_i32 = arith.constant 4 : i32
    %330 = vector.broadcast %c4_i32 : i32 to vector<8x1xi32>
    %331 = arith.cmpi slt, %330, %20 : vector<8x1xi32>
    %332 = arith.index_cast %c4_i32 : i32 to index
    %c0_72 = arith.constant 0 : index
    %c0_73 = arith.constant 0 : index
    %333 = vector.load %arg2[%332, %c0_72, %c0_73] : memref<8x8x128xbf16, #tpu.memory_space<vmem>>, vector<1x8x128xbf16>
    %334 = vector.shape_cast %333 : vector<1x8x128xbf16> to vector<8x128xbf16>
    %cst_74 = arith.constant dense<0.000000e+00> : vector<8x128xf32>
    %335 = tpu.matmul %283, %4, %cst_74 {dimension_numbers = #tpu.dot_dimension_numbers<[1], [0], [0], [1], [0, 0, 1, 1], [], []>} : vector<8x32xbf16>, vector<32x128xbf16>, vector<8x128xf32> -> vector<8x128xf32>
    %336 = arith.extf %334 : vector<8x128xbf16> to vector<8x128xf32>
    %337 = arith.addf %336, %335 : vector<8x128xf32>
    %338 = math.tanh %337 : vector<8x128xf32>
    %339 = vector.broadcast %14 : vector<1x128xf32> to vector<8x128xf32>
    %340 = arith.mulf %338, %339 : vector<8x128xf32>
    %341 = vector.broadcast %17 : vector<1x128xf32> to vector<8x128xf32>
    %342 = arith.addf %340, %341 : vector<8x128xf32>
    %343 = vector.extract_strided_slice %342 {offsets = [0, 0], sizes = [8, 32], strides = [1, 1]} : vector<8x128xf32> to vector<8x32xf32>
    %344 = vector.extract_strided_slice %342 {offsets = [0, 32], sizes = [8, 32], strides = [1, 1]} : vector<8x128xf32> to vector<8x32xf32>
    %345 = vector.extract_strided_slice %342 {offsets = [0, 64], sizes = [8, 32], strides = [1, 1]} : vector<8x128xf32> to vector<8x32xf32>
    %346 = vector.extract_strided_slice %342 {offsets = [0, 96], sizes = [8, 32], strides = [1, 1]} : vector<8x128xf32> to vector<8x32xf32>
    %347 = arith.mulf %344, %279 : vector<8x32xf32>
    %348 = arith.mulf %343, %345 : vector<8x32xf32>
    %349 = arith.addf %347, %348 : vector<8x32xf32>
    %350 = math.tanh %349 : vector<8x32xf32>
    %351 = arith.mulf %346, %350 : vector<8x32xf32>
    %352 = vector.shape_cast %331 : vector<8x1xi1> to vector<8x1xi1>
    %353 = vector.broadcast %352 : vector<8x1xi1> to vector<8x32xi1>
    %354 = arith.select %353, %349, %279 : vector<8x32xi1>, vector<8x32xf32>
    %355 = arith.truncf %351 : vector<8x32xf32> to vector<8x32xbf16>
    %356 = vector.shape_cast %331 : vector<8x1xi1> to vector<8x1xi1>
    %357 = vector.broadcast %356 : vector<8x1xi1> to vector<8x32xi1>
    %358 = arith.select %357, %355, %283 : vector<8x32xi1>, vector<8x32xbf16>
    %cst_75 = arith.constant 0.000000e+00 : f32
    %359 = vector.shape_cast %331 : vector<8x1xi1> to vector<8x1xi1>
    %360 = vector.broadcast %359 : vector<8x1xi1> to vector<8x32xi1>
    %361 = vector.broadcast %cst_75 : f32 to vector<8x32xf32>
    %362 = arith.select %360, %351, %361 : vector<8x32xi1>, vector<8x32xf32>
    %363 = arith.index_cast %c4_i32 : i32 to index
    %c0_76 = arith.constant 0 : index
    %c0_77 = arith.constant 0 : index
    %364 = vector.load %arg6[%363, %c0_76, %c0_77] : memref<8x8x32xf32, #tpu.memory_space<vmem>>, vector<1x8x32xf32>
    %365 = vector.shape_cast %364 : vector<1x8x32xf32> to vector<8x32xf32>
    %366 = vector.shape_cast %362 : vector<8x32xf32> to vector<1x8x32xf32>
    tpu.vector_store %arg6[%363, %c0_76, %c0_77], %366 {strides = array<i32>} : memref<8x8x32xf32, #tpu.memory_space<vmem>>, vector<1x8x32xf32>,
    %c7_i32_78 = arith.constant 7 : i32
    %367 = arith.subi %c7_i32_78, %c4_i32 : i32
    %368 = vector.broadcast %c4_i32 : i32 to vector<8x1xi32>
    %369 = arith.cmpi sge, %368, %25 : vector<8x1xi32>
    %370 = arith.index_cast %367 : i32 to index
    %c0_79 = arith.constant 0 : index
    %c0_80 = arith.constant 0 : index
    %371 = vector.load %arg3[%370, %c0_79, %c0_80] : memref<8x8x128xbf16, #tpu.memory_space<vmem>>, vector<1x8x128xbf16>
    %372 = vector.shape_cast %371 : vector<1x8x128xbf16> to vector<8x128xbf16>
    %cst_81 = arith.constant dense<0.000000e+00> : vector<8x128xf32>
    %373 = tpu.matmul %321, %5, %cst_81 {dimension_numbers = #tpu.dot_dimension_numbers<[1], [0], [0], [1], [0, 0, 1, 1], [], []>} : vector<8x32xbf16>, vector<32x128xbf16>, vector<8x128xf32> -> vector<8x128xf32>
    %374 = arith.extf %372 : vector<8x128xbf16> to vector<8x128xf32>
    %375 = arith.addf %374, %373 : vector<8x128xf32>
    %376 = math.tanh %375 : vector<8x128xf32>
    %377 = vector.broadcast %14 : vector<1x128xf32> to vector<8x128xf32>
    %378 = arith.mulf %376, %377 : vector<8x128xf32>
    %379 = vector.broadcast %17 : vector<1x128xf32> to vector<8x128xf32>
    %380 = arith.addf %378, %379 : vector<8x128xf32>
    %381 = vector.extract_strided_slice %380 {offsets = [0, 0], sizes = [8, 32], strides = [1, 1]} : vector<8x128xf32> to vector<8x32xf32>
    %382 = vector.extract_strided_slice %380 {offsets = [0, 32], sizes = [8, 32], strides = [1, 1]} : vector<8x128xf32> to vector<8x32xf32>
    %383 = vector.extract_strided_slice %380 {offsets = [0, 64], sizes = [8, 32], strides = [1, 1]} : vector<8x128xf32> to vector<8x32xf32>
    %384 = vector.extract_strided_slice %380 {offsets = [0, 96], sizes = [8, 32], strides = [1, 1]} : vector<8x128xf32> to vector<8x32xf32>
    %385 = arith.mulf %382, %317 : vector<8x32xf32>
    %386 = arith.mulf %381, %383 : vector<8x32xf32>
    %387 = arith.addf %385, %386 : vector<8x32xf32>
    %388 = math.tanh %387 : vector<8x32xf32>
    %389 = arith.mulf %384, %388 : vector<8x32xf32>
    %390 = vector.shape_cast %369 : vector<8x1xi1> to vector<8x1xi1>
    %391 = vector.broadcast %390 : vector<8x1xi1> to vector<8x32xi1>
    %392 = arith.select %391, %387, %317 : vector<8x32xi1>, vector<8x32xf32>
    %393 = arith.truncf %389 : vector<8x32xf32> to vector<8x32xbf16>
    %394 = vector.shape_cast %369 : vector<8x1xi1> to vector<8x1xi1>
    %395 = vector.broadcast %394 : vector<8x1xi1> to vector<8x32xi1>
    %396 = arith.select %395, %393, %321 : vector<8x32xi1>, vector<8x32xbf16>
    %cst_82 = arith.constant 0.000000e+00 : f32
    %397 = vector.shape_cast %369 : vector<8x1xi1> to vector<8x1xi1>
    %398 = vector.broadcast %397 : vector<8x1xi1> to vector<8x32xi1>
    %399 = vector.broadcast %cst_82 : f32 to vector<8x32xf32>
    %400 = arith.select %398, %389, %399 : vector<8x32xi1>, vector<8x32xf32>
    %401 = arith.index_cast %367 : i32 to index
    %c0_83 = arith.constant 0 : index
    %c0_84 = arith.constant 0 : index
    %402 = vector.load %arg7[%401, %c0_83, %c0_84] : memref<8x8x32xf32, #tpu.memory_space<vmem>>, vector<1x8x32xf32>
    %403 = vector.shape_cast %402 : vector<1x8x32xf32> to vector<8x32xf32>
    %404 = vector.shape_cast %400 : vector<8x32xf32> to vector<1x8x32xf32>
    tpu.vector_store %arg7[%401, %c0_83, %c0_84], %404 {strides = array<i32>} : memref<8x8x32xf32, #tpu.memory_space<vmem>>, vector<1x8x32xf32>,
    %c5_i32 = arith.constant 5 : i32
    %405 = vector.broadcast %c5_i32 : i32 to vector<8x1xi32>
    %406 = arith.cmpi slt, %405, %20 : vector<8x1xi32>
    %407 = arith.index_cast %c5_i32 : i32 to index
    %c0_85 = arith.constant 0 : index
    %c0_86 = arith.constant 0 : index
    %408 = vector.load %arg2[%407, %c0_85, %c0_86] : memref<8x8x128xbf16, #tpu.memory_space<vmem>>, vector<1x8x128xbf16>
    %409 = vector.shape_cast %408 : vector<1x8x128xbf16> to vector<8x128xbf16>
    %cst_87 = arith.constant dense<0.000000e+00> : vector<8x128xf32>
    %410 = tpu.matmul %358, %4, %cst_87 {dimension_numbers = #tpu.dot_dimension_numbers<[1], [0], [0], [1], [0, 0, 1, 1], [], []>} : vector<8x32xbf16>, vector<32x128xbf16>, vector<8x128xf32> -> vector<8x128xf32>
    %411 = arith.extf %409 : vector<8x128xbf16> to vector<8x128xf32>
    %412 = arith.addf %411, %410 : vector<8x128xf32>
    %413 = math.tanh %412 : vector<8x128xf32>
    %414 = vector.broadcast %14 : vector<1x128xf32> to vector<8x128xf32>
    %415 = arith.mulf %413, %414 : vector<8x128xf32>
    %416 = vector.broadcast %17 : vector<1x128xf32> to vector<8x128xf32>
    %417 = arith.addf %415, %416 : vector<8x128xf32>
    %418 = vector.extract_strided_slice %417 {offsets = [0, 0], sizes = [8, 32], strides = [1, 1]} : vector<8x128xf32> to vector<8x32xf32>
    %419 = vector.extract_strided_slice %417 {offsets = [0, 32], sizes = [8, 32], strides = [1, 1]} : vector<8x128xf32> to vector<8x32xf32>
    %420 = vector.extract_strided_slice %417 {offsets = [0, 64], sizes = [8, 32], strides = [1, 1]} : vector<8x128xf32> to vector<8x32xf32>
    %421 = vector.extract_strided_slice %417 {offsets = [0, 96], sizes = [8, 32], strides = [1, 1]} : vector<8x128xf32> to vector<8x32xf32>
    %422 = arith.mulf %419, %354 : vector<8x32xf32>
    %423 = arith.mulf %418, %420 : vector<8x32xf32>
    %424 = arith.addf %422, %423 : vector<8x32xf32>
    %425 = math.tanh %424 : vector<8x32xf32>
    %426 = arith.mulf %421, %425 : vector<8x32xf32>
    %427 = vector.shape_cast %406 : vector<8x1xi1> to vector<8x1xi1>
    %428 = vector.broadcast %427 : vector<8x1xi1> to vector<8x32xi1>
    %429 = arith.select %428, %424, %354 : vector<8x32xi1>, vector<8x32xf32>
    %430 = arith.truncf %426 : vector<8x32xf32> to vector<8x32xbf16>
    %431 = vector.shape_cast %406 : vector<8x1xi1> to vector<8x1xi1>
    %432 = vector.broadcast %431 : vector<8x1xi1> to vector<8x32xi1>
    %433 = arith.select %432, %430, %358 : vector<8x32xi1>, vector<8x32xbf16>
    %cst_88 = arith.constant 0.000000e+00 : f32
    %434 = vector.shape_cast %406 : vector<8x1xi1> to vector<8x1xi1>
    %435 = vector.broadcast %434 : vector<8x1xi1> to vector<8x32xi1>
    %436 = vector.broadcast %cst_88 : f32 to vector<8x32xf32>
    %437 = arith.select %435, %426, %436 : vector<8x32xi1>, vector<8x32xf32>
    %438 = arith.index_cast %c5_i32 : i32 to index
    %c0_89 = arith.constant 0 : index
    %c0_90 = arith.constant 0 : index
    %439 = vector.load %arg6[%438, %c0_89, %c0_90] : memref<8x8x32xf32, #tpu.memory_space<vmem>>, vector<1x8x32xf32>
    %440 = vector.shape_cast %439 : vector<1x8x32xf32> to vector<8x32xf32>
    %441 = vector.shape_cast %437 : vector<8x32xf32> to vector<1x8x32xf32>
    tpu.vector_store %arg6[%438, %c0_89, %c0_90], %441 {strides = array<i32>} : memref<8x8x32xf32, #tpu.memory_space<vmem>>, vector<1x8x32xf32>,
    %c7_i32_91 = arith.constant 7 : i32
    %442 = arith.subi %c7_i32_91, %c5_i32 : i32
    %443 = vector.broadcast %c5_i32 : i32 to vector<8x1xi32>
    %444 = arith.cmpi sge, %443, %25 : vector<8x1xi32>
    %445 = arith.index_cast %442 : i32 to index
    %c0_92 = arith.constant 0 : index
    %c0_93 = arith.constant 0 : index
    %446 = vector.load %arg3[%445, %c0_92, %c0_93] : memref<8x8x128xbf16, #tpu.memory_space<vmem>>, vector<1x8x128xbf16>
    %447 = vector.shape_cast %446 : vector<1x8x128xbf16> to vector<8x128xbf16>
    %cst_94 = arith.constant dense<0.000000e+00> : vector<8x128xf32>
    %448 = tpu.matmul %396, %5, %cst_94 {dimension_numbers = #tpu.dot_dimension_numbers<[1], [0], [0], [1], [0, 0, 1, 1], [], []>} : vector<8x32xbf16>, vector<32x128xbf16>, vector<8x128xf32> -> vector<8x128xf32>
    %449 = arith.extf %447 : vector<8x128xbf16> to vector<8x128xf32>
    %450 = arith.addf %449, %448 : vector<8x128xf32>
    %451 = math.tanh %450 : vector<8x128xf32>
    %452 = vector.broadcast %14 : vector<1x128xf32> to vector<8x128xf32>
    %453 = arith.mulf %451, %452 : vector<8x128xf32>
    %454 = vector.broadcast %17 : vector<1x128xf32> to vector<8x128xf32>
    %455 = arith.addf %453, %454 : vector<8x128xf32>
    %456 = vector.extract_strided_slice %455 {offsets = [0, 0], sizes = [8, 32], strides = [1, 1]} : vector<8x128xf32> to vector<8x32xf32>
    %457 = vector.extract_strided_slice %455 {offsets = [0, 32], sizes = [8, 32], strides = [1, 1]} : vector<8x128xf32> to vector<8x32xf32>
    %458 = vector.extract_strided_slice %455 {offsets = [0, 64], sizes = [8, 32], strides = [1, 1]} : vector<8x128xf32> to vector<8x32xf32>
    %459 = vector.extract_strided_slice %455 {offsets = [0, 96], sizes = [8, 32], strides = [1, 1]} : vector<8x128xf32> to vector<8x32xf32>
    %460 = arith.mulf %457, %392 : vector<8x32xf32>
    %461 = arith.mulf %456, %458 : vector<8x32xf32>
    %462 = arith.addf %460, %461 : vector<8x32xf32>
    %463 = math.tanh %462 : vector<8x32xf32>
    %464 = arith.mulf %459, %463 : vector<8x32xf32>
    %465 = vector.shape_cast %444 : vector<8x1xi1> to vector<8x1xi1>
    %466 = vector.broadcast %465 : vector<8x1xi1> to vector<8x32xi1>
    %467 = arith.select %466, %462, %392 : vector<8x32xi1>, vector<8x32xf32>
    %468 = arith.truncf %464 : vector<8x32xf32> to vector<8x32xbf16>
    %469 = vector.shape_cast %444 : vector<8x1xi1> to vector<8x1xi1>
    %470 = vector.broadcast %469 : vector<8x1xi1> to vector<8x32xi1>
    %471 = arith.select %470, %468, %396 : vector<8x32xi1>, vector<8x32xbf16>
    %cst_95 = arith.constant 0.000000e+00 : f32
    %472 = vector.shape_cast %444 : vector<8x1xi1> to vector<8x1xi1>
    %473 = vector.broadcast %472 : vector<8x1xi1> to vector<8x32xi1>
    %474 = vector.broadcast %cst_95 : f32 to vector<8x32xf32>
    %475 = arith.select %473, %464, %474 : vector<8x32xi1>, vector<8x32xf32>
    %476 = arith.index_cast %442 : i32 to index
    %c0_96 = arith.constant 0 : index
    %c0_97 = arith.constant 0 : index
    %477 = vector.load %arg7[%476, %c0_96, %c0_97] : memref<8x8x32xf32, #tpu.memory_space<vmem>>, vector<1x8x32xf32>
    %478 = vector.shape_cast %477 : vector<1x8x32xf32> to vector<8x32xf32>
    %479 = vector.shape_cast %475 : vector<8x32xf32> to vector<1x8x32xf32>
    tpu.vector_store %arg7[%476, %c0_96, %c0_97], %479 {strides = array<i32>} : memref<8x8x32xf32, #tpu.memory_space<vmem>>, vector<1x8x32xf32>,
    %c6_i32 = arith.constant 6 : i32
    %480 = vector.broadcast %c6_i32 : i32 to vector<8x1xi32>
    %481 = arith.cmpi slt, %480, %20 : vector<8x1xi32>
    %482 = arith.index_cast %c6_i32 : i32 to index
    %c0_98 = arith.constant 0 : index
    %c0_99 = arith.constant 0 : index
    %483 = vector.load %arg2[%482, %c0_98, %c0_99] : memref<8x8x128xbf16, #tpu.memory_space<vmem>>, vector<1x8x128xbf16>
    %484 = vector.shape_cast %483 : vector<1x8x128xbf16> to vector<8x128xbf16>
    %cst_100 = arith.constant dense<0.000000e+00> : vector<8x128xf32>
    %485 = tpu.matmul %433, %4, %cst_100 {dimension_numbers = #tpu.dot_dimension_numbers<[1], [0], [0], [1], [0, 0, 1, 1], [], []>} : vector<8x32xbf16>, vector<32x128xbf16>, vector<8x128xf32> -> vector<8x128xf32>
    %486 = arith.extf %484 : vector<8x128xbf16> to vector<8x128xf32>
    %487 = arith.addf %486, %485 : vector<8x128xf32>
    %488 = math.tanh %487 : vector<8x128xf32>
    %489 = vector.broadcast %14 : vector<1x128xf32> to vector<8x128xf32>
    %490 = arith.mulf %488, %489 : vector<8x128xf32>
    %491 = vector.broadcast %17 : vector<1x128xf32> to vector<8x128xf32>
    %492 = arith.addf %490, %491 : vector<8x128xf32>
    %493 = vector.extract_strided_slice %492 {offsets = [0, 0], sizes = [8, 32], strides = [1, 1]} : vector<8x128xf32> to vector<8x32xf32>
    %494 = vector.extract_strided_slice %492 {offsets = [0, 32], sizes = [8, 32], strides = [1, 1]} : vector<8x128xf32> to vector<8x32xf32>
    %495 = vector.extract_strided_slice %492 {offsets = [0, 64], sizes = [8, 32], strides = [1, 1]} : vector<8x128xf32> to vector<8x32xf32>
    %496 = vector.extract_strided_slice %492 {offsets = [0, 96], sizes = [8, 32], strides = [1, 1]} : vector<8x128xf32> to vector<8x32xf32>
    %497 = arith.mulf %494, %429 : vector<8x32xf32>
    %498 = arith.mulf %493, %495 : vector<8x32xf32>
    %499 = arith.addf %497, %498 : vector<8x32xf32>
    %500 = math.tanh %499 : vector<8x32xf32>
    %501 = arith.mulf %496, %500 : vector<8x32xf32>
    %502 = vector.shape_cast %481 : vector<8x1xi1> to vector<8x1xi1>
    %503 = vector.broadcast %502 : vector<8x1xi1> to vector<8x32xi1>
    %504 = arith.select %503, %499, %429 : vector<8x32xi1>, vector<8x32xf32>
    %505 = arith.truncf %501 : vector<8x32xf32> to vector<8x32xbf16>
    %506 = vector.shape_cast %481 : vector<8x1xi1> to vector<8x1xi1>
    %507 = vector.broadcast %506 : vector<8x1xi1> to vector<8x32xi1>
    %508 = arith.select %507, %505, %433 : vector<8x32xi1>, vector<8x32xbf16>
    %cst_101 = arith.constant 0.000000e+00 : f32
    %509 = vector.shape_cast %481 : vector<8x1xi1> to vector<8x1xi1>
    %510 = vector.broadcast %509 : vector<8x1xi1> to vector<8x32xi1>
    %511 = vector.broadcast %cst_101 : f32 to vector<8x32xf32>
    %512 = arith.select %510, %501, %511 : vector<8x32xi1>, vector<8x32xf32>
    %513 = arith.index_cast %c6_i32 : i32 to index
    %c0_102 = arith.constant 0 : index
    %c0_103 = arith.constant 0 : index
    %514 = vector.load %arg6[%513, %c0_102, %c0_103] : memref<8x8x32xf32, #tpu.memory_space<vmem>>, vector<1x8x32xf32>
    %515 = vector.shape_cast %514 : vector<1x8x32xf32> to vector<8x32xf32>
    %516 = vector.shape_cast %512 : vector<8x32xf32> to vector<1x8x32xf32>
    tpu.vector_store %arg6[%513, %c0_102, %c0_103], %516 {strides = array<i32>} : memref<8x8x32xf32, #tpu.memory_space<vmem>>, vector<1x8x32xf32>,
    %c7_i32_104 = arith.constant 7 : i32
    %517 = arith.subi %c7_i32_104, %c6_i32 : i32
    %518 = vector.broadcast %c6_i32 : i32 to vector<8x1xi32>
    %519 = arith.cmpi sge, %518, %25 : vector<8x1xi32>
    %520 = arith.index_cast %517 : i32 to index
    %c0_105 = arith.constant 0 : index
    %c0_106 = arith.constant 0 : index
    %521 = vector.load %arg3[%520, %c0_105, %c0_106] : memref<8x8x128xbf16, #tpu.memory_space<vmem>>, vector<1x8x128xbf16>
    %522 = vector.shape_cast %521 : vector<1x8x128xbf16> to vector<8x128xbf16>
    %cst_107 = arith.constant dense<0.000000e+00> : vector<8x128xf32>
    %523 = tpu.matmul %471, %5, %cst_107 {dimension_numbers = #tpu.dot_dimension_numbers<[1], [0], [0], [1], [0, 0, 1, 1], [], []>} : vector<8x32xbf16>, vector<32x128xbf16>, vector<8x128xf32> -> vector<8x128xf32>
    %524 = arith.extf %522 : vector<8x128xbf16> to vector<8x128xf32>
    %525 = arith.addf %524, %523 : vector<8x128xf32>
    %526 = math.tanh %525 : vector<8x128xf32>
    %527 = vector.broadcast %14 : vector<1x128xf32> to vector<8x128xf32>
    %528 = arith.mulf %526, %527 : vector<8x128xf32>
    %529 = vector.broadcast %17 : vector<1x128xf32> to vector<8x128xf32>
    %530 = arith.addf %528, %529 : vector<8x128xf32>
    %531 = vector.extract_strided_slice %530 {offsets = [0, 0], sizes = [8, 32], strides = [1, 1]} : vector<8x128xf32> to vector<8x32xf32>
    %532 = vector.extract_strided_slice %530 {offsets = [0, 32], sizes = [8, 32], strides = [1, 1]} : vector<8x128xf32> to vector<8x32xf32>
    %533 = vector.extract_strided_slice %530 {offsets = [0, 64], sizes = [8, 32], strides = [1, 1]} : vector<8x128xf32> to vector<8x32xf32>
    %534 = vector.extract_strided_slice %530 {offsets = [0, 96], sizes = [8, 32], strides = [1, 1]} : vector<8x128xf32> to vector<8x32xf32>
    %535 = arith.mulf %532, %467 : vector<8x32xf32>
    %536 = arith.mulf %531, %533 : vector<8x32xf32>
    %537 = arith.addf %535, %536 : vector<8x32xf32>
    %538 = math.tanh %537 : vector<8x32xf32>
    %539 = arith.mulf %534, %538 : vector<8x32xf32>
    %540 = vector.shape_cast %519 : vector<8x1xi1> to vector<8x1xi1>
    %541 = vector.broadcast %540 : vector<8x1xi1> to vector<8x32xi1>
    %542 = arith.select %541, %537, %467 : vector<8x32xi1>, vector<8x32xf32>
    %543 = arith.truncf %539 : vector<8x32xf32> to vector<8x32xbf16>
    %544 = vector.shape_cast %519 : vector<8x1xi1> to vector<8x1xi1>
    %545 = vector.broadcast %544 : vector<8x1xi1> to vector<8x32xi1>
    %546 = arith.select %545, %543, %471 : vector<8x32xi1>, vector<8x32xbf16>
    %cst_108 = arith.constant 0.000000e+00 : f32
    %547 = vector.shape_cast %519 : vector<8x1xi1> to vector<8x1xi1>
    %548 = vector.broadcast %547 : vector<8x1xi1> to vector<8x32xi1>
    %549 = vector.broadcast %cst_108 : f32 to vector<8x32xf32>
    %550 = arith.select %548, %539, %549 : vector<8x32xi1>, vector<8x32xf32>
    %551 = arith.index_cast %517 : i32 to index
    %c0_109 = arith.constant 0 : index
    %c0_110 = arith.constant 0 : index
    %552 = vector.load %arg7[%551, %c0_109, %c0_110] : memref<8x8x32xf32, #tpu.memory_space<vmem>>, vector<1x8x32xf32>
    %553 = vector.shape_cast %552 : vector<1x8x32xf32> to vector<8x32xf32>
    %554 = vector.shape_cast %550 : vector<8x32xf32> to vector<1x8x32xf32>
    tpu.vector_store %arg7[%551, %c0_109, %c0_110], %554 {strides = array<i32>} : memref<8x8x32xf32, #tpu.memory_space<vmem>>, vector<1x8x32xf32>,
    %c7_i32_111 = arith.constant 7 : i32
    %555 = vector.broadcast %c7_i32_111 : i32 to vector<8x1xi32>
    %556 = arith.cmpi slt, %555, %20 : vector<8x1xi32>
    %557 = arith.index_cast %c7_i32_111 : i32 to index
    %c0_112 = arith.constant 0 : index
    %c0_113 = arith.constant 0 : index
    %558 = vector.load %arg2[%557, %c0_112, %c0_113] : memref<8x8x128xbf16, #tpu.memory_space<vmem>>, vector<1x8x128xbf16>
    %559 = vector.shape_cast %558 : vector<1x8x128xbf16> to vector<8x128xbf16>
    %cst_114 = arith.constant dense<0.000000e+00> : vector<8x128xf32>
    %560 = tpu.matmul %508, %4, %cst_114 {dimension_numbers = #tpu.dot_dimension_numbers<[1], [0], [0], [1], [0, 0, 1, 1], [], []>} : vector<8x32xbf16>, vector<32x128xbf16>, vector<8x128xf32> -> vector<8x128xf32>
    %561 = arith.extf %559 : vector<8x128xbf16> to vector<8x128xf32>
    %562 = arith.addf %561, %560 : vector<8x128xf32>
    %563 = math.tanh %562 : vector<8x128xf32>
    %564 = vector.broadcast %14 : vector<1x128xf32> to vector<8x128xf32>
    %565 = arith.mulf %563, %564 : vector<8x128xf32>
    %566 = vector.broadcast %17 : vector<1x128xf32> to vector<8x128xf32>
    %567 = arith.addf %565, %566 : vector<8x128xf32>
    %568 = vector.extract_strided_slice %567 {offsets = [0, 0], sizes = [8, 32], strides = [1, 1]} : vector<8x128xf32> to vector<8x32xf32>
    %569 = vector.extract_strided_slice %567 {offsets = [0, 32], sizes = [8, 32], strides = [1, 1]} : vector<8x128xf32> to vector<8x32xf32>
    %570 = vector.extract_strided_slice %567 {offsets = [0, 64], sizes = [8, 32], strides = [1, 1]} : vector<8x128xf32> to vector<8x32xf32>
    %571 = vector.extract_strided_slice %567 {offsets = [0, 96], sizes = [8, 32], strides = [1, 1]} : vector<8x128xf32> to vector<8x32xf32>
    %572 = arith.mulf %569, %504 : vector<8x32xf32>
    %573 = arith.mulf %568, %570 : vector<8x32xf32>
    %574 = arith.addf %572, %573 : vector<8x32xf32>
    %575 = math.tanh %574 : vector<8x32xf32>
    %576 = arith.mulf %571, %575 : vector<8x32xf32>
    %577 = vector.shape_cast %556 : vector<8x1xi1> to vector<8x1xi1>
    %578 = vector.broadcast %577 : vector<8x1xi1> to vector<8x32xi1>
    %579 = arith.select %578, %574, %504 : vector<8x32xi1>, vector<8x32xf32>
    %580 = arith.truncf %576 : vector<8x32xf32> to vector<8x32xbf16>
    %581 = vector.shape_cast %556 : vector<8x1xi1> to vector<8x1xi1>
    %582 = vector.broadcast %581 : vector<8x1xi1> to vector<8x32xi1>
    %583 = arith.select %582, %580, %508 : vector<8x32xi1>, vector<8x32xbf16>
    %cst_115 = arith.constant 0.000000e+00 : f32
    %584 = vector.shape_cast %556 : vector<8x1xi1> to vector<8x1xi1>
    %585 = vector.broadcast %584 : vector<8x1xi1> to vector<8x32xi1>
    %586 = vector.broadcast %cst_115 : f32 to vector<8x32xf32>
    %587 = arith.select %585, %576, %586 : vector<8x32xi1>, vector<8x32xf32>
    %588 = arith.index_cast %c7_i32_111 : i32 to index
    %c0_116 = arith.constant 0 : index
    %c0_117 = arith.constant 0 : index
    %589 = vector.load %arg6[%588, %c0_116, %c0_117] : memref<8x8x32xf32, #tpu.memory_space<vmem>>, vector<1x8x32xf32>
    %590 = vector.shape_cast %589 : vector<1x8x32xf32> to vector<8x32xf32>
    %591 = vector.shape_cast %587 : vector<8x32xf32> to vector<1x8x32xf32>
    tpu.vector_store %arg6[%588, %c0_116, %c0_117], %591 {strides = array<i32>} : memref<8x8x32xf32, #tpu.memory_space<vmem>>, vector<1x8x32xf32>,
    %c7_i32_118 = arith.constant 7 : i32
    %592 = arith.subi %c7_i32_118, %c7_i32_111 : i32
    %593 = vector.broadcast %c7_i32_111 : i32 to vector<8x1xi32>
    %594 = arith.cmpi sge, %593, %25 : vector<8x1xi32>
    %595 = arith.index_cast %592 : i32 to index
    %c0_119 = arith.constant 0 : index
    %c0_120 = arith.constant 0 : index
    %596 = vector.load %arg3[%595, %c0_119, %c0_120] : memref<8x8x128xbf16, #tpu.memory_space<vmem>>, vector<1x8x128xbf16>
    %597 = vector.shape_cast %596 : vector<1x8x128xbf16> to vector<8x128xbf16>
    %cst_121 = arith.constant dense<0.000000e+00> : vector<8x128xf32>
    %598 = tpu.matmul %546, %5, %cst_121 {dimension_numbers = #tpu.dot_dimension_numbers<[1], [0], [0], [1], [0, 0, 1, 1], [], []>} : vector<8x32xbf16>, vector<32x128xbf16>, vector<8x128xf32> -> vector<8x128xf32>
    %599 = arith.extf %597 : vector<8x128xbf16> to vector<8x128xf32>
    %600 = arith.addf %599, %598 : vector<8x128xf32>
    %601 = math.tanh %600 : vector<8x128xf32>
    %602 = vector.broadcast %14 : vector<1x128xf32> to vector<8x128xf32>
    %603 = arith.mulf %601, %602 : vector<8x128xf32>
    %604 = vector.broadcast %17 : vector<1x128xf32> to vector<8x128xf32>
    %605 = arith.addf %603, %604 : vector<8x128xf32>
    %606 = vector.extract_strided_slice %605 {offsets = [0, 0], sizes = [8, 32], strides = [1, 1]} : vector<8x128xf32> to vector<8x32xf32>
    %607 = vector.extract_strided_slice %605 {offsets = [0, 32], sizes = [8, 32], strides = [1, 1]} : vector<8x128xf32> to vector<8x32xf32>
    %608 = vector.extract_strided_slice %605 {offsets = [0, 64], sizes = [8, 32], strides = [1, 1]} : vector<8x128xf32> to vector<8x32xf32>
    %609 = vector.extract_strided_slice %605 {offsets = [0, 96], sizes = [8, 32], strides = [1, 1]} : vector<8x128xf32> to vector<8x32xf32>
    %610 = arith.mulf %607, %542 : vector<8x32xf32>
    %611 = arith.mulf %606, %608 : vector<8x32xf32>
    %612 = arith.addf %610, %611 : vector<8x32xf32>
    %613 = math.tanh %612 : vector<8x32xf32>
    %614 = arith.mulf %609, %613 : vector<8x32xf32>
    %615 = vector.shape_cast %594 : vector<8x1xi1> to vector<8x1xi1>
    %616 = vector.broadcast %615 : vector<8x1xi1> to vector<8x32xi1>
    %617 = arith.select %616, %612, %542 : vector<8x32xi1>, vector<8x32xf32>
    %618 = arith.truncf %614 : vector<8x32xf32> to vector<8x32xbf16>
    %619 = vector.shape_cast %594 : vector<8x1xi1> to vector<8x1xi1>
    %620 = vector.broadcast %619 : vector<8x1xi1> to vector<8x32xi1>
    %621 = arith.select %620, %618, %546 : vector<8x32xi1>, vector<8x32xbf16>
    %cst_122 = arith.constant 0.000000e+00 : f32
    %622 = vector.shape_cast %594 : vector<8x1xi1> to vector<8x1xi1>
    %623 = vector.broadcast %622 : vector<8x1xi1> to vector<8x32xi1>
    %624 = vector.broadcast %cst_122 : f32 to vector<8x32xf32>
    %625 = arith.select %623, %614, %624 : vector<8x32xi1>, vector<8x32xf32>
    %626 = arith.index_cast %592 : i32 to index
    %c0_123 = arith.constant 0 : index
    %c0_124 = arith.constant 0 : index
    %627 = vector.load %arg7[%626, %c0_123, %c0_124] : memref<8x8x32xf32, #tpu.memory_space<vmem>>, vector<1x8x32xf32>
    %628 = vector.shape_cast %627 : vector<1x8x32xf32> to vector<8x32xf32>
    %629 = vector.shape_cast %625 : vector<8x32xf32> to vector<1x8x32xf32>
    tpu.vector_store %arg7[%626, %c0_123, %c0_124], %629 {strides = array<i32>} : memref<8x8x32xf32, #tpu.memory_space<vmem>>, vector<1x8x32xf32>,
    %c8_i32_125 = arith.constant 8 : i32
    %c0_126 = arith.constant 0 : index
    %c0_127 = arith.constant 0 : index
    %630 = vector.load %arg9[%c0_126, %c0_127] : memref<8x32xbf16, #tpu.memory_space<vmem>>, vector<8x32xbf16>
    tpu.vector_store %arg9[%c0_126, %c0_127], %583 {strides = array<i32>} : memref<8x32xbf16, #tpu.memory_space<vmem>>, vector<8x32xbf16>,
    %c0_128 = arith.constant 0 : index
    %c0_129 = arith.constant 0 : index
    %631 = vector.load %arg10[%c0_128, %c0_129] : memref<8x32xf32, #tpu.memory_space<vmem>>, vector<8x32xf32>
    tpu.vector_store %arg10[%c0_128, %c0_129], %579 {strides = array<i32>} : memref<8x32xf32, #tpu.memory_space<vmem>>, vector<8x32xf32>,
    %c0_130 = arith.constant 0 : index
    %c0_131 = arith.constant 0 : index
    %632 = vector.load %arg11[%c0_130, %c0_131] : memref<8x32xbf16, #tpu.memory_space<vmem>>, vector<8x32xbf16>
    tpu.vector_store %arg11[%c0_130, %c0_131], %621 {strides = array<i32>} : memref<8x32xbf16, #tpu.memory_space<vmem>>, vector<8x32xbf16>,
    %c0_132 = arith.constant 0 : index
    %c0_133 = arith.constant 0 : index
    %633 = vector.load %arg12[%c0_132, %c0_133] : memref<8x32xf32, #tpu.memory_space<vmem>>, vector<8x32xf32>
    tpu.vector_store %arg12[%c0_132, %c0_133], %617 {strides = array<i32>} : memref<8x32xf32, #tpu.memory_space<vmem>>, vector<8x32xf32>,
    %c0_i32_134 = arith.constant 0 : i32
    %634 = arith.cmpi eq, %arg0, %c0_i32_134 : i32
    %635 = arith.extui %634 : i1 to i32
    %c0_i32_135 = arith.constant 0 : i32
    %636 = arith.cmpi ne, %635, %c0_i32_135 : i32
    scf.if %636 {
      %637 = arith.extf %583 : vector<8x32xbf16> to vector<8x32xf32>
      %c0_136 = arith.constant 0 : index
      %c0_137 = arith.constant 0 : index
      %c0_138 = arith.constant 0 : index
      %638 = vector.load %arg8[%c0_136, %c0_137, %c0_138] : memref<2x8x32xf32, #tpu.memory_space<vmem>>, vector<1x8x32xf32>
      %639 = vector.shape_cast %638 : vector<1x8x32xf32> to vector<8x32xf32>
      %640 = vector.shape_cast %637 : vector<8x32xf32> to vector<1x8x32xf32>
      tpu.vector_store %arg8[%c0_136, %c0_137, %c0_138], %640 {strides = array<i32>} : memref<2x8x32xf32, #tpu.memory_space<vmem>>, vector<1x8x32xf32>,
      %641 = arith.extf %621 : vector<8x32xbf16> to vector<8x32xf32>
      %c1 = arith.constant 1 : index
      %c0_139 = arith.constant 0 : index
      %c0_140 = arith.constant 0 : index
      %642 = vector.load %arg8[%c1, %c0_139, %c0_140] : memref<2x8x32xf32, #tpu.memory_space<vmem>>, vector<1x8x32xf32>
      %643 = vector.shape_cast %642 : vector<1x8x32xf32> to vector<8x32xf32>
      %644 = vector.shape_cast %641 : vector<8x32xf32> to vector<1x8x32xf32>
      tpu.vector_store %arg8[%c1, %c0_139, %c0_140], %644 {strides = array<i32>} : memref<2x8x32xf32, #tpu.memory_space<vmem>>, vector<1x8x32xf32>,
    } else {
    }
    return
  }
  func.func @transform_0(%arg0: i32) -> (i32, i32) {
    %c0_i32 = arith.constant 0 : i32
    %c0_i32_0 = arith.constant 0 : i32
    %c0_i32_1 = arith.constant 0 : i32
    return %c0_i32, %c0_i32_0 : i32, i32
  }
  func.func @transform_1(%arg0: i32) -> (i32, i32, i32) {
    %c0_i32 = arith.constant 0 : i32
    %c0_i32_0 = arith.constant 0 : i32
    %c0_i32_1 = arith.constant 0 : i32
    return %arg0, %c0_i32, %c0_i32_0 : i32, i32, i32
  }
  func.func @transform_2(%arg0: i32) -> (i32, i32, i32) {
    %c0_i32 = arith.constant 0 : i32
    %0 = arith.subi %c0_i32, %arg0 : i32
    %c0_i32_0 = arith.constant 0 : i32
    %c0_i32_1 = arith.constant 0 : i32
    %c0_i32_2 = arith.constant 0 : i32
    return %0, %c0_i32_0, %c0_i32_1 : i32, i32, i32
  }
  func.func @transform_3(%arg0: i32) -> (i32, i32) {
    %c0_i32 = arith.constant 0 : i32
    %c0_i32_0 = arith.constant 0 : i32
    %c0_i32_1 = arith.constant 0 : i32
    return %c0_i32, %c0_i32_0 : i32, i32
  }
  func.func @transform_4(%arg0: i32) -> (i32, i32) {
    %c0_i32 = arith.constant 0 : i32
    %c0_i32_0 = arith.constant 0 : i32
    %c0_i32_1 = arith.constant 0 : i32
    return %c0_i32, %c0_i32_0 : i32, i32
  }
  func.func @transform_5(%arg0: i32) -> (i32, i32, i32) {
    %c0_i32 = arith.constant 0 : i32
    %c0_i32_0 = arith.constant 0 : i32
    %c0_i32_1 = arith.constant 0 : i32
    return %arg0, %c0_i32, %c0_i32_0 : i32, i32, i32
  }
  func.func @transform_6(%arg0: i32) -> (i32, i32, i32) {
    %c0_i32 = arith.constant 0 : i32
    %0 = arith.subi %c0_i32, %arg0 : i32
    %c0_i32_0 = arith.constant 0 : i32
    %c0_i32_1 = arith.constant 0 : i32
    %c0_i32_2 = arith.constant 0 : i32
    return %0, %c0_i32_0, %c0_i32_1 : i32, i32, i32
  }
  func.func @transform_7(%arg0: i32) -> (i32, i32, i32) {
    %c0_i32 = arith.constant 0 : i32
    %c0_i32_0 = arith.constant 0 : i32
    %c0_i32_1 = arith.constant 0 : i32
    %c0_i32_2 = arith.constant 0 : i32
    return %c0_i32, %c0_i32_0, %c0_i32_1 : i32, i32, i32
  }
}

</mosaic_0001>

<llo_original>
// kernel: lstm_encoder_forward.2
$region0: #{lstm_encoder_forward.2}
  #allocation0 [shape = 'u32[]', space=smem, size = 0x4, offset = 0x4, fixed_abs, tag = 'smem constant byte address 0x4 - core index']
  #allocation1 [shape = 'u32[72,128]{1,0:T(1,128)}', space=vmem, size = 0x9000, scoped, tag = 'internal scratch']
  #allocation2 [shape = 'bf16[8,32]{1,0:T(8,128)(2,1)}', space=vmem, size = 0x800, scoped, tag = 'scratch operand']
  #allocation3 [shape = 'f32[8,32]{1,0:T(8,128)}', space=vmem, size = 0x1000, scoped, tag = 'scratch operand']
  #allocation4 [shape = 'bf16[8,32]{1,0:T(8,128)(2,1)}', space=vmem, size = 0x800, scoped, tag = 'scratch operand']
  #allocation5 [shape = 'f32[8,32]{1,0:T(8,128)}', space=vmem, size = 0x1000, scoped, tag = 'scratch operand']
  %s0 = inlined_call_operand.vmem [shape: s32[8,1], index: 0, kind: input, shape index: {}]
  %s1 = inlined_call_operand.vmem [shape: bf16[8,8,128], index: 1, kind: input, shape index: {}]
  %s2 = inlined_call_operand.vmem [shape: bf16[8,8,128], index: 2, kind: input, shape index: {}]
  %s3 = inlined_call_operand.vmem [shape: bf16[32,128], index: 3, kind: input, shape index: {}]
  %s4 = inlined_call_operand.vmem [shape: bf16[32,128], index: 4, kind: input, shape index: {}]
  %s5 = inlined_call_operand.vmem [shape: f32[8,8,32], index: 5, kind: output, shape index: {0}]
  %s6 = inlined_call_operand.vmem [shape: f32[8,8,32], index: 6, kind: output, shape index: {1}]
  %s7 = inlined_call_operand.vmem [shape: f32[2,8,32], index: 7, kind: output, shape index: {2}]
  %8 = xla_tuple %s5, %s6, %s7
  %s9 = sld [smem:[#allocation0]]
  $region54: #{lstm_encoder_forward.2} parent=0
    _
  %s11 = ssub.s32 1, %s9
  %s12 = scalar_select 0, %s11, %s9
  // Predicated region
  $region2: #{lstm_encoder_forward.2} parent=0 // pred_check
    _
  $region3: #{lstm_encoder_forward.2} parent=0 // pred_check_branch
    %14 = sbr.rel (0) target = $region5
  $region4: #{lstm_encoder_forward.2} parent=0 // pred_region
    _
  $region5: #{lstm_encoder_forward.2} parent=0 // pred_fallthru
    _
  // Predicated region
  $region6: #{lstm_encoder_forward.2} parent=0 // pred_check
    _
  $region7: #{lstm_encoder_forward.2} parent=0 // pred_check_branch
    %16 = sbr.rel (0) target = $region9
  $region8: #{lstm_encoder_forward.2} parent=0 // pred_region
    _
  $region9: #{lstm_encoder_forward.2} parent=0 // pred_fallthru
    _
  // Predicated region
  $region10: #{lstm_encoder_forward.2} parent=0 // pred_check
    _
  $region11: #{lstm_encoder_forward.2} parent=0 // pred_check_branch
    %18 = sbr.rel (0) target = $region13
  $region12: #{lstm_encoder_forward.2} parent=0 // pred_region
    %s19 = ssub.s32 0, 0
    %s20 = smul.u32 8, %s19
    %p21 = scmp.lt.s32.totalorder %s20, 7
    %s22 = scalar_select %p21, %s20, 7
    %s23 = smul.addr %s22, 4
    %s24 = scalar_lea.vmem %s2, %s23
    %s25 = ssub.s32 0, 0
    %s26 = smul.u32 8, %s25
  $region13: #{lstm_encoder_forward.2} parent=0 // pred_fallthru
    _
  // Predicated region
  $region14: #{lstm_encoder_forward.2} parent=0 // pred_check
    _
  $region15: #{lstm_encoder_forward.2} parent=0 // pred_check_branch
    %28 = sbr.rel (0) target = $region17
  $region16: #{lstm_encoder_forward.2} parent=0 // pred_region
    _
  $region17: #{lstm_encoder_forward.2} parent=0 // pred_fallthru
    _
  // Predicated region
  $region18: #{lstm_encoder_forward.2} parent=0 // pred_check
    _
  $region19: #{lstm_encoder_forward.2} parent=0 // pred_check_branch
    %30 = sbr.rel (0) target = $region21
  $region20: #{lstm_encoder_forward.2} parent=0 // pred_region
    _
  $region21: #{lstm_encoder_forward.2} parent=0 // pred_fallthru
    _
  %s31 = ssub.s32 0, 0
  %s32 = smul.u32 8, %s31
  %p33 = scmp.lt.s32.totalorder %s32, 7
  %s34 = scalar_select %p33, %s32, 7
  %s35 = smul.addr %s34, 4
  %s36 = scalar_lea.vmem %s2, %s35
  %s37 = ssub.s32 0, 0
  %s38 = smul.u32 8, %s37
  %p39 = scmp.lt.s32.totalorder %s38, 7
  %s40 = scalar_select %p39, %s38, 7
  %s41 = smul.addr %s40, 8
  %s42 = scalar_lea.vmem %s6, %s41
  %s43 = ssub.s32 0, 0
  %s44 = smul.u32 8, %s43
  %p45 = scmp.lt.s32.totalorder %s44, 7
  %s46 = scalar_select %p45, %s44, 7
  %s47 = smul.addr %s46, 4
  %s48 = scalar_lea.vmem %s2, %s47
  %s49 = ssub.s32 0, 0
  %s50 = smul.u32 8, %s49
  %s51 = ssub.s32 0, 0
  %s52 = smul.u32 8, %s51
  %p53 = scmp.lt.s32.totalorder %s52, 7
  %s54 = scalar_select %p53, %s52, 7
  %s55 = smul.addr %s54, 8
  %s56 = scalar_lea.vmem %s6, %s55
  %s57 = ssub.s32 0, 0
  %s58 = smul.u32 8, %s57
  %p60 = scmp.eq.s32.totalorder 0, 0
  // Predicated region
  $region22: #{lstm_encoder_forward.2} parent=0 // pred_check
    %p61 = pneg %p60
  $region23: #{lstm_encoder_forward.2} parent=0 // pred_check_branch
    %63 = sbr.rel (%p61) target = $region25
  $region24: #{lstm_encoder_forward.2} parent=0 // pred_region
    %vm64 = vcmask 257024
    %65 = vst.msk [vmem:[#allocation2] sm:$0xf] %vm64, 0
    %vm66 = vcmask 261120
    %67 = vst.msk [vmem:[#allocation3] sm:$0xff] %vm66, 0.0
    %68 = vst.msk [vmem:[#allocation4] sm:$0xf] %vm64, 0
    %69 = vst.msk [vmem:[#allocation5] sm:$0xff] %vm66, 0.0
  $region25: #{lstm_encoder_forward.2} parent=0 // pred_fallthru
    _
  %v70 = vld [vmem:[%s0] sm:$0xff]
  %v71 = vld [vmem:[%s3] sm:$0xf]
  %v72 = vld [vmem:[%s3 + $0x4] sm:$0xf]
  %v73 = vld [vmem:[%s3 + $0x8] sm:$0xf]
  %v74 = vld [vmem:[%s3 + $0xc] sm:$0xf]
  %v75 = vld [vmem:[%s4] sm:$0xf]
  %v76 = vld [vmem:[%s4 + $0x4] sm:$0xf]
  %v77 = vld [vmem:[%s4 + $0x8] sm:$0xf]
  %v78 = vld [vmem:[%s4 + $0xc] sm:$0xf]
  %v79 = vlaneseq
  %v80 = vand.u32 %v79, 127
  %vm81 = vcmp.ge.s32.totalorder %v80, 64
  %vm82 = vcmp.lt.s32.totalorder %v80, 96
  %vm83 = vmand %vm81, %vm82
  %v84 = vsel %vm83, 1.0, 0.5
  %v85 = vsel %vm83, 0.0, 0.5
  %s86 = smul.u32 0, 8
  %v87 = vstv %s86
  %v88 = vsub.s32 %v70, %v87
  %s89 = ssub.s32 0, 0
  %s90 = smul.u32 %s89, 8
  %s91 = sadd.s32 %s90, 8
  %v92 = vstv %s91
  %v93 = vsub.s32 %v92, %v70
  %v94 = vld [vmem:[#allocation2] sm:$0xf]
  %v95 = vld [vmem:[#allocation3] sm:$0xff]
  %v96 = vld [vmem:[#allocation4] sm:$0xf]
  %v97 = vld [vmem:[#allocation5] sm:$0xff]
  %vm98 = vcmp.gt.s32.totalorder %v88, 0
  %v99 = vld [vmem:[%s1] sm:$0xf]
  %v104 = vunpack.c.l.b16 %v71
  %v105 = vunpack.c.l.b16 %v72
  %v106 = vunpack.c.l.b16 %v73
  %v107 = vunpack.c.l.b16 %v74
  %v108 = vpack.c.b16 %v105, %v104
  %v109 = vpack.c.b16 %v107, %v106
  %vm112 = vcmask 261120
  %v114 = vsel %vm112, %v94, 0
  %116 = vmatpush.bf16.msra.mxu0 0
  %117 = vmatpush.bf16.msra.mxu0 0
  %118 = vmatpush.bf16.msra.mxu0 0
  %119 = vmatpush.bf16.msra.mxu0 0
  %120 = vmatpush.bf16.msra.mxu0 0
  %121 = vmatpush.bf16.msra.mxu0 0
  %122 = vmatpush.bf16.msra.mxu0 %v109
  %123 = vmatpush.bf16.msra.mxu0 %v108
  %124 = vmatmul.bf16.gmra.mxu0 %v114
  %v125 = vpop.f32.mrf.mxu0
  %v126 = vadd.f32 0.0, %v125
  %v127 = vpop.f32.mrf.mxu0
  %128 = vdwg.mxu0
  %v129 = vunpack.c.l.bf16 %v99
  %v130 = vadd.f32 %v129, %v126
  %v131 = vtanh.pop %v130
  %v132 = vmul.f32 %v131, %v84
  %v133 = vadd.f32 %v132, %v85
  %135 = vrot.lane.b32.xlu0 %v95, 32
  %v136 = vpop.permute.xlu0 %135
  %v138 = vmul.f32 %v133, %v136
  %140 = vrot.lane.b32.xlu0 %v133, 64
  %v141 = vpop.permute.xlu0 %140
  %v143 = vmul.f32 %v133, %v141
  %145 = vrot.lane.b32.xlu0 %v143, 32
  %v146 = vpop.permute.xlu0 %145
  %v148 = vadd.f32 %v138, %v146
  %v149 = vtanh.pop %v148
  %151 = vrot.lane.b32.xlu0 %v149, 64
  %v152 = vpop.permute.xlu0 %151
  %v154 = vmul.f32 %v133, %v152
  %v155 = vsel %vm98, 1, 0
  %156 = vset.pattern.permute.xlu0 0
  %157 = vperm.xlu0 %156, %v155
  %v158 = vpop.permute.xlu0 %157
  %vm159 = vcmp.eq.s32.totalorder %v158, 1
  %v160 = vsel %vm159, %v148, %v136
  %v161 = vpack.c.bf16 %v154, %v154
  %vm162 = vmpackc.low %vm159, %vm159
  %164 = vrot.lane.b32.xlu0 %v94, 96
  %v165 = vpop.permute.xlu0 %164
  %v167 = vsel %vm162, %v161, %v165
  %v168 = vsel %vm159, %v154, 0.0
  %170 = vrot.lane.b32.xlu0 %v168, 32
  %v171 = vpop.permute.xlu0 %170
  %173 = vst.msk [vmem:[%s5] sm:$0xff] %vm112, %v171
  %vm174 = vcmp.le.s32.totalorder %v93, 0
  %s175 = scalar_lea.vmem %s48, 28
  %v176 = vld [vmem:[%s175] sm:$0xf]
  %v181 = vunpack.c.l.b16 %v75
  %v182 = vunpack.c.l.b16 %v76
  %v183 = vunpack.c.l.b16 %v77
  %v184 = vunpack.c.l.b16 %v78
  %v185 = vpack.c.b16 %v182, %v181
  %v186 = vpack.c.b16 %v184, %v183
  %v190 = vsel %vm112, %v96, 0
  %192 = vmatpush.bf16.msra.mxu0 0
  %193 = vmatpush.bf16.msra.mxu0 0
  %194 = vmatpush.bf16.msra.mxu0 0
  %195 = vmatpush.bf16.msra.mxu0 0
  %196 = vmatpush.bf16.msra.mxu0 0
  %197 = vmatpush.bf16.msra.mxu0 0
  %198 = vmatpush.bf16.msra.mxu0 %v186
  %199 = vmatpush.bf16.msra.mxu0 %v185
  %200 = vmatmul.bf16.gmra.mxu0 %v190
  %v201 = vpop.f32.mrf.mxu0
  %v202 = vadd.f32 0.0, %v201
  %v203 = vpop.f32.mrf.mxu0
  %204 = vdwg.mxu0
  %v205 = vunpack.c.l.bf16 %v176
  %v206 = vadd.f32 %v205, %v202
  %v207 = vtanh.pop %v206
  %v208 = vmul.f32 %v207, %v84
  %v209 = vadd.f32 %v208, %v85
  %211 = vrot.lane.b32.xlu0 %v97, 32
  %v212 = vpop.permute.xlu0 %211
  %v214 = vmul.f32 %v209, %v212
  %216 = vrot.lane.b32.xlu0 %v209, 64
  %v217 = vpop.permute.xlu0 %216
  %v219 = vmul.f32 %v209, %v217
  %221 = vrot.lane.b32.xlu0 %v219, 32
  %v222 = vpop.permute.xlu0 %221
  %v224 = vadd.f32 %v214, %v222
  %v225 = vtanh.pop %v224
  %227 = vrot.lane.b32.xlu0 %v225, 64
  %v228 = vpop.permute.xlu0 %227
  %v230 = vmul.f32 %v209, %v228
  %v231 = vsel %vm174, 1, 0
  %232 = vset.pattern.permute.xlu0 0
  %233 = vperm.xlu0 %232, %v231
  %v234 = vpop.permute.xlu0 %233
  %vm235 = vcmp.eq.s32.totalorder %v234, 1
  %v236 = vsel %vm235, %v224, %v212
  %v237 = vpack.c.bf16 %v230, %v230
  %vm238 = vmpackc.low %vm235, %vm235
  %240 = vrot.lane.b32.xlu0 %v96, 96
  %v241 = vpop.permute.xlu0 %240
  %v243 = vsel %vm238, %v237, %v241
  %v244 = vsel %vm235, %v230, 0.0
  %246 = vrot.lane.b32.xlu0 %v244, 32
  %v247 = vpop.permute.xlu0 %246
  %s249 = scalar_lea.vmem %s56, 56
  %250 = vst.msk [vmem:[%s249] sm:$0xff] %vm112, %v247
  %vm251 = vcmp.gt.s32.totalorder %v88, 1
  %s252 = scalar_lea.vmem %s1, 4
  %v253 = vld [vmem:[%s252] sm:$0xf]
  %v255 = vunpack.c.l.b16 %v167
  %v256 = vpack.c.b16 %v255, %v255
  %257 = vrot.lane.b32.xlu0 %v256, 32
  %v258 = vpop.permute.xlu0 %257
  %v260 = vsel %vm112, %v258, 0
  %262 = vmatpush.bf16.msra.mxu0 0
  %263 = vmatpush.bf16.msra.mxu0 0
  %264 = vmatpush.bf16.msra.mxu0 0
  %265 = vmatpush.bf16.msra.mxu0 0
  %266 = vmatpush.bf16.msra.mxu0 0
  %267 = vmatpush.bf16.msra.mxu0 0
  %268 = vmatpush.bf16.msra.mxu0 %v109
  %269 = vmatpush.bf16.msra.mxu0 %v108
  %270 = vmatmul.bf16.gmra.mxu0 %v260
  %v271 = vpop.f32.mrf.mxu0
  %v272 = vadd.f32 0.0, %v271
  %v273 = vpop.f32.mrf.mxu0
  %274 = vdwg.mxu0
  %v275 = vunpack.c.l.bf16 %v253
  %v276 = vadd.f32 %v275, %v272
  %v277 = vtanh.pop %v276
  %v278 = vmul.f32 %v277, %v84
  %v279 = vadd.f32 %v278, %v85
  %v280 = vmul.f32 %v279, %v160
  %282 = vrot.lane.b32.xlu0 %v279, 64
  %v283 = vpop.permute.xlu0 %282
  %v285 = vmul.f32 %v279, %v283
  %287 = vrot.lane.b32.xlu0 %v285, 32
  %v288 = vpop.permute.xlu0 %287
  %v290 = vadd.f32 %v280, %v288
  %v291 = vtanh.pop %v290
  %293 = vrot.lane.b32.xlu0 %v291, 64
  %v294 = vpop.permute.xlu0 %293
  %v296 = vmul.f32 %v279, %v294
  %v297 = vsel %vm251, 1, 0
  %298 = vset.pattern.permute.xlu0 0
  %299 = vperm.xlu0 %298, %v297
  %v300 = vpop.permute.xlu0 %299
  %vm301 = vcmp.eq.s32.totalorder %v300, 1
  %v302 = vsel %vm301, %v290, %v160
  %v303 = vpack.c.bf16 %v296, %v296
  %vm304 = vmpackc.low %vm301, %vm301
  %v305 = vsel %vm304, %v303, %v167
  %v306 = vsel %vm301, %v296, 0.0
  %308 = vrot.lane.b32.xlu0 %v306, 32
  %v309 = vpop.permute.xlu0 %308
  %s311 = scalar_lea.vmem %s5, 8
  %312 = vst.msk [vmem:[%s311] sm:$0xff] %vm112, %v309
  %vm313 = vcmp.le.s32.totalorder %v93, 1
  %s314 = scalar_lea.vmem %s48, 24
  %v315 = vld [vmem:[%s314] sm:$0xf]
  %v317 = vunpack.c.l.b16 %v243
  %v318 = vpack.c.b16 %v317, %v317
  %319 = vrot.lane.b32.xlu0 %v318, 32
  %v320 = vpop.permute.xlu0 %319
  %v322 = vsel %vm112, %v320, 0
  %324 = vmatpush.bf16.msra.mxu0 0
  %325 = vmatpush.bf16.msra.mxu0 0
  %326 = vmatpush.bf16.msra.mxu0 0
  %327 = vmatpush.bf16.msra.mxu0 0
  %328 = vmatpush.bf16.msra.mxu0 0
  %329 = vmatpush.bf16.msra.mxu0 0
  %330 = vmatpush.bf16.msra.mxu0 %v186
  %331 = vmatpush.bf16.msra.mxu0 %v185
  %332 = vmatmul.bf16.gmra.mxu0 %v322
  %v333 = vpop.f32.mrf.mxu0
  %v334 = vadd.f32 0.0, %v333
  %v335 = vpop.f32.mrf.mxu0
  %336 = vdwg.mxu0
  %v337 = vunpack.c.l.bf16 %v315
  %v338 = vadd.f32 %v337, %v334
  %v339 = vtanh.pop %v338
  %v340 = vmul.f32 %v339, %v84
  %v341 = vadd.f32 %v340, %v85
  %v342 = vmul.f32 %v341, %v236
  %344 = vrot.lane.b32.xlu0 %v341, 64
  %v345 = vpop.permute.xlu0 %344
  %v347 = vmul.f32 %v341, %v345
  %349 = vrot.lane.b32.xlu0 %v347, 32
  %v350 = vpop.permute.xlu0 %349
  %v352 = vadd.f32 %v342, %v350
  %v353 = vtanh.pop %v352
  %355 = vrot.lane.b32.xlu0 %v353, 64
  %v356 = vpop.permute.xlu0 %355
  %v358 = vmul.f32 %v341, %v356
  %v359 = vsel %vm313, 1, 0
  %360 = vset.pattern.permute.xlu0 0
  %361 = vperm.xlu0 %360, %v359
  %v362 = vpop.permute.xlu0 %361
  %vm363 = vcmp.eq.s32.totalorder %v362, 1
  %v364 = vsel %vm363, %v352, %v236
  %v365 = vpack.c.bf16 %v358, %v358
  %vm366 = vmpackc.low %vm363, %vm363
  %v367 = vsel %vm366, %v365, %v243
  %v368 = vsel %vm363, %v358, 0.0
  %370 = vrot.lane.b32.xlu0 %v368, 32
  %v371 = vpop.permute.xlu0 %370
  %s373 = scalar_lea.vmem %s56, 48
  %374 = vst.msk [vmem:[%s373] sm:$0xff] %vm112, %v371
  %vm375 = vcmp.gt.s32.totalorder %v88, 2
  %s376 = scalar_lea.vmem %s1, 8
  %v377 = vld [vmem:[%s376] sm:$0xf]
  %v379 = vunpack.c.l.b16 %v305
  %v380 = vpack.c.b16 %v379, %v379
  %381 = vrot.lane.b32.xlu0 %v380, 32
  %v382 = vpop.permute.xlu0 %381
  %v384 = vsel %vm112, %v382, 0
  %386 = vmatpush.bf16.msra.mxu0 0
  %387 = vmatpush.bf16.msra.mxu0 0
  %388 = vmatpush.bf16.msra.mxu0 0
  %389 = vmatpush.bf16.msra.mxu0 0
  %390 = vmatpush.bf16.msra.mxu0 0
  %391 = vmatpush.bf16.msra.mxu0 0
  %392 = vmatpush.bf16.msra.mxu0 %v109
  %393 = vmatpush.bf16.msra.mxu0 %v108
  %394 = vmatmul.bf16.gmra.mxu0 %v384
  %v395 = vpop.f32.mrf.mxu0
  %v396 = vadd.f32 0.0, %v395
  %v397 = vpop.f32.mrf.mxu0
  %398 = vdwg.mxu0
  %v399 = vunpack.c.l.bf16 %v377
  %v400 = vadd.f32 %v399, %v396
  %v401 = vtanh.pop %v400
  %v402 = vmul.f32 %v401, %v84
  %v403 = vadd.f32 %v402, %v85
  %v404 = vmul.f32 %v403, %v302
  %406 = vrot.lane.b32.xlu0 %v403, 64
  %v407 = vpop.permute.xlu0 %406
  %v409 = vmul.f32 %v403, %v407
  %411 = vrot.lane.b32.xlu0 %v409, 32
  %v412 = vpop.permute.xlu0 %411
  %v414 = vadd.f32 %v404, %v412
  %v415 = vtanh.pop %v414
  %417 = vrot.lane.b32.xlu0 %v415, 64
  %v418 = vpop.permute.xlu0 %417
  %v420 = vmul.f32 %v403, %v418
  %v421 = vsel %vm375, 1, 0
  %422 = vset.pattern.permute.xlu0 0
  %423 = vperm.xlu0 %422, %v421
  %v424 = vpop.permute.xlu0 %423
  %vm425 = vcmp.eq.s32.totalorder %v424, 1
  %v426 = vsel %vm425, %v414, %v302
  %v427 = vpack.c.bf16 %v420, %v420
  %vm428 = vmpackc.low %vm425, %vm425
  %v429 = vsel %vm428, %v427, %v305
  %v430 = vsel %vm425, %v420, 0.0
  %432 = vrot.lane.b32.xlu0 %v430, 32
  %v433 = vpop.permute.xlu0 %432
  %s435 = scalar_lea.vmem %s5, 16
  %436 = vst.msk [vmem:[%s435] sm:$0xff] %vm112, %v433
  %vm437 = vcmp.le.s32.totalorder %v93, 2
  %s438 = scalar_lea.vmem %s48, 20
  %v439 = vld [vmem:[%s438] sm:$0xf]
  %v441 = vunpack.c.l.b16 %v367
  %v442 = vpack.c.b16 %v441, %v441
  %443 = vrot.lane.b32.xlu0 %v442, 32
  %v444 = vpop.permute.xlu0 %443
  %v446 = vsel %vm112, %v444, 0
  %448 = vmatpush.bf16.msra.mxu0 0
  %449 = vmatpush.bf16.msra.mxu0 0
  %450 = vmatpush.bf16.msra.mxu0 0
  %451 = vmatpush.bf16.msra.mxu0 0
  %452 = vmatpush.bf16.msra.mxu0 0
  %453 = vmatpush.bf16.msra.mxu0 0
  %454 = vmatpush.bf16.msra.mxu0 %v186
  %455 = vmatpush.bf16.msra.mxu0 %v185
  %456 = vmatmul.bf16.gmra.mxu0 %v446
  %v457 = vpop.f32.mrf.mxu0
  %v458 = vadd.f32 0.0, %v457
  %v459 = vpop.f32.mrf.mxu0
  %460 = vdwg.mxu0
  %v461 = vunpack.c.l.bf16 %v439
  %v462 = vadd.f32 %v461, %v458
  %v463 = vtanh.pop %v462
  %v464 = vmul.f32 %v463, %v84
  %v465 = vadd.f32 %v464, %v85
  %v466 = vmul.f32 %v465, %v364
  %468 = vrot.lane.b32.xlu0 %v465, 64
  %v469 = vpop.permute.xlu0 %468
  %v471 = vmul.f32 %v465, %v469
  %473 = vrot.lane.b32.xlu0 %v471, 32
  %v474 = vpop.permute.xlu0 %473
  %v476 = vadd.f32 %v466, %v474
  %v477 = vtanh.pop %v476
  %479 = vrot.lane.b32.xlu0 %v477, 64
  %v480 = vpop.permute.xlu0 %479
  %v482 = vmul.f32 %v465, %v480
  %v483 = vsel %vm437, 1, 0
  %484 = vset.pattern.permute.xlu0 0
  %485 = vperm.xlu0 %484, %v483
  %v486 = vpop.permute.xlu0 %485
  %vm487 = vcmp.eq.s32.totalorder %v486, 1
  %v488 = vsel %vm487, %v476, %v364
  %v489 = vpack.c.bf16 %v482, %v482
  %vm490 = vmpackc.low %vm487, %vm487
  %v491 = vsel %vm490, %v489, %v367
  %v492 = vsel %vm487, %v482, 0.0
  %494 = vrot.lane.b32.xlu0 %v492, 32
  %v495 = vpop.permute.xlu0 %494
  %s497 = scalar_lea.vmem %s56, 40
  %498 = vst.msk [vmem:[%s497] sm:$0xff] %vm112, %v495
  %vm499 = vcmp.gt.s32.totalorder %v88, 3
  %s500 = scalar_lea.vmem %s1, 12
  %v501 = vld [vmem:[%s500] sm:$0xf]
  %v503 = vunpack.c.l.b16 %v429
  %v504 = vpack.c.b16 %v503, %v503
  %505 = vrot.lane.b32.xlu0 %v504, 32
  %v506 = vpop.permute.xlu0 %505
  %v508 = vsel %vm112, %v506, 0
  %510 = vmatpush.bf16.msra.mxu0 0
  %511 = vmatpush.bf16.msra.mxu0 0
  %512 = vmatpush.bf16.msra.mxu0 0
  %513 = vmatpush.bf16.msra.mxu0 0
  %514 = vmatpush.bf16.msra.mxu0 0
  %515 = vmatpush.bf16.msra.mxu0 0
  %516 = vmatpush.bf16.msra.mxu0 %v109
  %517 = vmatpush.bf16.msra.mxu0 %v108
  %518 = vmatmul.bf16.gmra.mxu0 %v508
  %v519 = vpop.f32.mrf.mxu0
  %v520 = vadd.f32 0.0, %v519
  %v521 = vpop.f32.mrf.mxu0
  %522 = vdwg.mxu0
  %v523 = vunpack.c.l.bf16 %v501
  %v524 = vadd.f32 %v523, %v520
  %v525 = vtanh.pop %v524
  %v526 = vmul.f32 %v525, %v84
  %v527 = vadd.f32 %v526, %v85
  %v528 = vmul.f32 %v527, %v426
  %530 = vrot.lane.b32.xlu0 %v527, 64
  %v531 = vpop.permute.xlu0 %530
  %v533 = vmul.f32 %v527, %v531
  %535 = vrot.lane.b32.xlu0 %v533, 32
  %v536 = vpop.permute.xlu0 %535
  %v538 = vadd.f32 %v528, %v536
  %v539 = vtanh.pop %v538
  %541 = vrot.lane.b32.xlu0 %v539, 64
  %v542 = vpop.permute.xlu0 %541
  %v544 = vmul.f32 %v527, %v542
  %v545 = vsel %vm499, 1, 0
  %546 = vset.pattern.permute.xlu0 0
  %547 = vperm.xlu0 %546, %v545
  %v548 = vpop.permute.xlu0 %547
  %vm549 = vcmp.eq.s32.totalorder %v548, 1
  %v550 = vsel %vm549, %v538, %v426
  %v551 = vpack.c.bf16 %v544, %v544
  %vm552 = vmpackc.low %vm549, %vm549
  %v553 = vsel %vm552, %v551, %v429
  %v554 = vsel %vm549, %v544, 0.0
  %556 = vrot.lane.b32.xlu0 %v554, 32
  %v557 = vpop.permute.xlu0 %556
  %s559 = scalar_lea.vmem %s5, 24
  %560 = vst.msk [vmem:[%s559] sm:$0xff] %vm112, %v557
  %vm561 = vcmp.le.s32.totalorder %v93, 3
  %s562 = scalar_lea.vmem %s48, 16
  %v563 = vld [vmem:[%s562] sm:$0xf]
  %v565 = vunpack.c.l.b16 %v491
  %v566 = vpack.c.b16 %v565, %v565
  %567 = vrot.lane.b32.xlu0 %v566, 32
  %v568 = vpop.permute.xlu0 %567
  %v570 = vsel %vm112, %v568, 0
  %572 = vmatpush.bf16.msra.mxu0 0
  %573 = vmatpush.bf16.msra.mxu0 0
  %574 = vmatpush.bf16.msra.mxu0 0
  %575 = vmatpush.bf16.msra.mxu0 0
  %576 = vmatpush.bf16.msra.mxu0 0
  %577 = vmatpush.bf16.msra.mxu0 0
  %578 = vmatpush.bf16.msra.mxu0 %v186
  %579 = vmatpush.bf16.msra.mxu0 %v185
  %580 = vmatmul.bf16.gmra.mxu0 %v570
  %v581 = vpop.f32.mrf.mxu0
  %v582 = vadd.f32 0.0, %v581
  %v583 = vpop.f32.mrf.mxu0
  %584 = vdwg.mxu0
  %v585 = vunpack.c.l.bf16 %v563
  %v586 = vadd.f32 %v585, %v582
  %v587 = vtanh.pop %v586
  %v588 = vmul.f32 %v587, %v84
  %v589 = vadd.f32 %v588, %v85
  %v590 = vmul.f32 %v589, %v488
  %592 = vrot.lane.b32.xlu0 %v589, 64
  %v593 = vpop.permute.xlu0 %592
  %v595 = vmul.f32 %v589, %v593
  %597 = vrot.lane.b32.xlu0 %v595, 32
  %v598 = vpop.permute.xlu0 %597
  %v600 = vadd.f32 %v590, %v598
  %v601 = vtanh.pop %v600
  %603 = vrot.lane.b32.xlu0 %v601, 64
  %v604 = vpop.permute.xlu0 %603
  %v606 = vmul.f32 %v589, %v604
  %v607 = vsel %vm561, 1, 0
  %608 = vset.pattern.permute.xlu0 0
  %609 = vperm.xlu0 %608, %v607
  %v610 = vpop.permute.xlu0 %609
  %vm611 = vcmp.eq.s32.totalorder %v610, 1
  %v612 = vsel %vm611, %v600, %v488
  %v613 = vpack.c.bf16 %v606, %v606
  %vm614 = vmpackc.low %vm611, %vm611
  %v615 = vsel %vm614, %v613, %v491
  %v616 = vsel %vm611, %v606, 0.0
  %618 = vrot.lane.b32.xlu0 %v616, 32
  %v619 = vpop.permute.xlu0 %618
  %s621 = scalar_lea.vmem %s56, 32
  %622 = vst.msk [vmem:[%s621] sm:$0xff] %vm112, %v619
  %vm623 = vcmp.gt.s32.totalorder %v88, 4
  %s624 = scalar_lea.vmem %s1, 16
  %v625 = vld [vmem:[%s624] sm:$0xf]
  %v627 = vunpack.c.l.b16 %v553
  %v628 = vpack.c.b16 %v627, %v627
  %629 = vrot.lane.b32.xlu0 %v628, 32
  %v630 = vpop.permute.xlu0 %629
  %v632 = vsel %vm112, %v630, 0
  %634 = vmatpush.bf16.msra.mxu0 0
  %635 = vmatpush.bf16.msra.mxu0 0
  %636 = vmatpush.bf16.msra.mxu0 0
  %637 = vmatpush.bf16.msra.mxu0 0
  %638 = vmatpush.bf16.msra.mxu0 0
  %639 = vmatpush.bf16.msra.mxu0 0
  %640 = vmatpush.bf16.msra.mxu0 %v109
  %641 = vmatpush.bf16.msra.mxu0 %v108
  %642 = vmatmul.bf16.gmra.mxu0 %v632
  %v643 = vpop.f32.mrf.mxu0
  %v644 = vadd.f32 0.0, %v643
  %v645 = vpop.f32.mrf.mxu0
  %646 = vdwg.mxu0
  %v647 = vunpack.c.l.bf16 %v625
  %v648 = vadd.f32 %v647, %v644
  %v649 = vtanh.pop %v648
  %v650 = vmul.f32 %v649, %v84
  %v651 = vadd.f32 %v650, %v85
  %v652 = vmul.f32 %v651, %v550
  %654 = vrot.lane.b32.xlu0 %v651, 64
  %v655 = vpop.permute.xlu0 %654
  %v657 = vmul.f32 %v651, %v655
  %659 = vrot.lane.b32.xlu0 %v657, 32
  %v660 = vpop.permute.xlu0 %659
  %v662 = vadd.f32 %v652, %v660
  %v663 = vtanh.pop %v662
  %665 = vrot.lane.b32.xlu0 %v663, 64
  %v666 = vpop.permute.xlu0 %665
  %v668 = vmul.f32 %v651, %v666
  %v669 = vsel %vm623, 1, 0
  %670 = vset.pattern.permute.xlu0 0
  %671 = vperm.xlu0 %670, %v669
  %v672 = vpop.permute.xlu0 %671
  %vm673 = vcmp.eq.s32.totalorder %v672, 1
  %v674 = vsel %vm673, %v662, %v550
  %v675 = vpack.c.bf16 %v668, %v668
  %vm676 = vmpackc.low %vm673, %vm673
  %v677 = vsel %vm676, %v675, %v553
  %v678 = vsel %vm673, %v668, 0.0
  %680 = vrot.lane.b32.xlu0 %v678, 32
  %v681 = vpop.permute.xlu0 %680
  %s683 = scalar_lea.vmem %s5, 32
  %684 = vst.msk [vmem:[%s683] sm:$0xff] %vm112, %v681
  %vm685 = vcmp.le.s32.totalorder %v93, 4
  %s686 = scalar_lea.vmem %s48, 12
  %v687 = vld [vmem:[%s686] sm:$0xf]
  %v689 = vunpack.c.l.b16 %v615
  %v690 = vpack.c.b16 %v689, %v689
  %691 = vrot.lane.b32.xlu0 %v690, 32
  %v692 = vpop.permute.xlu0 %691
  %v694 = vsel %vm112, %v692, 0
  %696 = vmatpush.bf16.msra.mxu0 0
  %697 = vmatpush.bf16.msra.mxu0 0
  %698 = vmatpush.bf16.msra.mxu0 0
  %699 = vmatpush.bf16.msra.mxu0 0
  %700 = vmatpush.bf16.msra.mxu0 0
  %701 = vmatpush.bf16.msra.mxu0 0
  %702 = vmatpush.bf16.msra.mxu0 %v186
  %703 = vmatpush.bf16.msra.mxu0 %v185
  %704 = vmatmul.bf16.gmra.mxu0 %v694
  %v705 = vpop.f32.mrf.mxu0
  %v706 = vadd.f32 0.0, %v705
  %v707 = vpop.f32.mrf.mxu0
  %708 = vdwg.mxu0
  %v709 = vunpack.c.l.bf16 %v687
  %v710 = vadd.f32 %v709, %v706
  %v711 = vtanh.pop %v710
  %v712 = vmul.f32 %v711, %v84
  %v713 = vadd.f32 %v712, %v85
  %v714 = vmul.f32 %v713, %v612
  %716 = vrot.lane.b32.xlu0 %v713, 64
  %v717 = vpop.permute.xlu0 %716
  %v719 = vmul.f32 %v713, %v717
  %721 = vrot.lane.b32.xlu0 %v719, 32
  %v722 = vpop.permute.xlu0 %721
  %v724 = vadd.f32 %v714, %v722
  %v725 = vtanh.pop %v724
  %727 = vrot.lane.b32.xlu0 %v725, 64
  %v728 = vpop.permute.xlu0 %727
  %v730 = vmul.f32 %v713, %v728
  %v731 = vsel %vm685, 1, 0
  %732 = vset.pattern.permute.xlu0 0
  %733 = vperm.xlu0 %732, %v731
  %v734 = vpop.permute.xlu0 %733
  %vm735 = vcmp.eq.s32.totalorder %v734, 1
  %v736 = vsel %vm735, %v724, %v612
  %v737 = vpack.c.bf16 %v730, %v730
  %vm738 = vmpackc.low %vm735, %vm735
  %v739 = vsel %vm738, %v737, %v615
  %v740 = vsel %vm735, %v730, 0.0
  %742 = vrot.lane.b32.xlu0 %v740, 32
  %v743 = vpop.permute.xlu0 %742
  %s745 = scalar_lea.vmem %s56, 24
  %746 = vst.msk [vmem:[%s745] sm:$0xff] %vm112, %v743
  %vm747 = vcmp.gt.s32.totalorder %v88, 5
  %s748 = scalar_lea.vmem %s1, 20
  %v749 = vld [vmem:[%s748] sm:$0xf]
  %v751 = vunpack.c.l.b16 %v677
  %v752 = vpack.c.b16 %v751, %v751
  %753 = vrot.lane.b32.xlu0 %v752, 32
  %v754 = vpop.permute.xlu0 %753
  %v756 = vsel %vm112, %v754, 0
  %758 = vmatpush.bf16.msra.mxu0 0
  %759 = vmatpush.bf16.msra.mxu0 0
  %760 = vmatpush.bf16.msra.mxu0 0
  %761 = vmatpush.bf16.msra.mxu0 0
  %762 = vmatpush.bf16.msra.mxu0 0
  %763 = vmatpush.bf16.msra.mxu0 0
  %764 = vmatpush.bf16.msra.mxu0 %v109
  %765 = vmatpush.bf16.msra.mxu0 %v108
  %766 = vmatmul.bf16.gmra.mxu0 %v756
  %v767 = vpop.f32.mrf.mxu0
  %v768 = vadd.f32 0.0, %v767
  %v769 = vpop.f32.mrf.mxu0
  %770 = vdwg.mxu0
  %v771 = vunpack.c.l.bf16 %v749
  %v772 = vadd.f32 %v771, %v768
  %v773 = vtanh.pop %v772
  %v774 = vmul.f32 %v773, %v84
  %v775 = vadd.f32 %v774, %v85
  %v776 = vmul.f32 %v775, %v674
  %778 = vrot.lane.b32.xlu0 %v775, 64
  %v779 = vpop.permute.xlu0 %778
  %v781 = vmul.f32 %v775, %v779
  %783 = vrot.lane.b32.xlu0 %v781, 32
  %v784 = vpop.permute.xlu0 %783
  %v786 = vadd.f32 %v776, %v784
  %v787 = vtanh.pop %v786
  %789 = vrot.lane.b32.xlu0 %v787, 64
  %v790 = vpop.permute.xlu0 %789
  %v792 = vmul.f32 %v775, %v790
  %v793 = vsel %vm747, 1, 0
  %794 = vset.pattern.permute.xlu0 0
  %795 = vperm.xlu0 %794, %v793
  %v796 = vpop.permute.xlu0 %795
  %vm797 = vcmp.eq.s32.totalorder %v796, 1
  %v798 = vsel %vm797, %v786, %v674
  %v799 = vpack.c.bf16 %v792, %v792
  %vm800 = vmpackc.low %vm797, %vm797
  %v801 = vsel %vm800, %v799, %v677
  %v802 = vsel %vm797, %v792, 0.0
  %804 = vrot.lane.b32.xlu0 %v802, 32
  %v805 = vpop.permute.xlu0 %804
  %s807 = scalar_lea.vmem %s5, 40
  %808 = vst.msk [vmem:[%s807] sm:$0xff] %vm112, %v805
  %vm809 = vcmp.le.s32.totalorder %v93, 5
  %s810 = scalar_lea.vmem %s48, 8
  %v811 = vld [vmem:[%s810] sm:$0xf]
  %v813 = vunpack.c.l.b16 %v739
  %v814 = vpack.c.b16 %v813, %v813
  %815 = vrot.lane.b32.xlu0 %v814, 32
  %v816 = vpop.permute.xlu0 %815
  %v818 = vsel %vm112, %v816, 0
  %820 = vmatpush.bf16.msra.mxu0 0
  %821 = vmatpush.bf16.msra.mxu0 0
  %822 = vmatpush.bf16.msra.mxu0 0
  %823 = vmatpush.bf16.msra.mxu0 0
  %824 = vmatpush.bf16.msra.mxu0 0
  %825 = vmatpush.bf16.msra.mxu0 0
  %826 = vmatpush.bf16.msra.mxu0 %v186
  %827 = vmatpush.bf16.msra.mxu0 %v185
  %828 = vmatmul.bf16.gmra.mxu0 %v818
  %v829 = vpop.f32.mrf.mxu0
  %v830 = vadd.f32 0.0, %v829
  %v831 = vpop.f32.mrf.mxu0
  %832 = vdwg.mxu0
  %v833 = vunpack.c.l.bf16 %v811
  %v834 = vadd.f32 %v833, %v830
  %v835 = vtanh.pop %v834
  %v836 = vmul.f32 %v835, %v84
  %v837 = vadd.f32 %v836, %v85
  %v838 = vmul.f32 %v837, %v736
  %840 = vrot.lane.b32.xlu0 %v837, 64
  %v841 = vpop.permute.xlu0 %840
  %v843 = vmul.f32 %v837, %v841
  %845 = vrot.lane.b32.xlu0 %v843, 32
  %v846 = vpop.permute.xlu0 %845
  %v848 = vadd.f32 %v838, %v846
  %v849 = vtanh.pop %v848
  %851 = vrot.lane.b32.xlu0 %v849, 64
  %v852 = vpop.permute.xlu0 %851
  %v854 = vmul.f32 %v837, %v852
  %v855 = vsel %vm809, 1, 0
  %856 = vset.pattern.permute.xlu0 0
  %857 = vperm.xlu0 %856, %v855
  %v858 = vpop.permute.xlu0 %857
  %vm859 = vcmp.eq.s32.totalorder %v858, 1
  %v860 = vsel %vm859, %v848, %v736
  %v861 = vpack.c.bf16 %v854, %v854
  %vm862 = vmpackc.low %vm859, %vm859
  %v863 = vsel %vm862, %v861, %v739
  %v864 = vsel %vm859, %v854, 0.0
  %866 = vrot.lane.b32.xlu0 %v864, 32
  %v867 = vpop.permute.xlu0 %866
  %s869 = scalar_lea.vmem %s56, 16
  %870 = vst.msk [vmem:[%s869] sm:$0xff] %vm112, %v867
  %vm871 = vcmp.gt.s32.totalorder %v88, 6
  %s872 = scalar_lea.vmem %s1, 24
  %v873 = vld [vmem:[%s872] sm:$0xf]
  %v875 = vunpack.c.l.b16 %v801
  %v876 = vpack.c.b16 %v875, %v875
  %877 = vrot.lane.b32.xlu0 %v876, 32
  %v878 = vpop.permute.xlu0 %877
  %v880 = vsel %vm112, %v878, 0
  %882 = vmatpush.bf16.msra.mxu0 0
  %883 = vmatpush.bf16.msra.mxu0 0
  %884 = vmatpush.bf16.msra.mxu0 0
  %885 = vmatpush.bf16.msra.mxu0 0
  %886 = vmatpush.bf16.msra.mxu0 0
  %887 = vmatpush.bf16.msra.mxu0 0
  %888 = vmatpush.bf16.msra.mxu0 %v109
  %889 = vmatpush.bf16.msra.mxu0 %v108
  %890 = vmatmul.bf16.gmra.mxu0 %v880
  %v891 = vpop.f32.mrf.mxu0
  %v892 = vadd.f32 0.0, %v891
  %v893 = vpop.f32.mrf.mxu0
  %894 = vdwg.mxu0
  %v895 = vunpack.c.l.bf16 %v873
  %v896 = vadd.f32 %v895, %v892
  %v897 = vtanh.pop %v896
  %v898 = vmul.f32 %v897, %v84
  %v899 = vadd.f32 %v898, %v85
  %v900 = vmul.f32 %v899, %v798
  %902 = vrot.lane.b32.xlu0 %v899, 64
  %v903 = vpop.permute.xlu0 %902
  %v905 = vmul.f32 %v899, %v903
  %907 = vrot.lane.b32.xlu0 %v905, 32
  %v908 = vpop.permute.xlu0 %907
  %v910 = vadd.f32 %v900, %v908
  %v911 = vtanh.pop %v910
  %913 = vrot.lane.b32.xlu0 %v911, 64
  %v914 = vpop.permute.xlu0 %913
  %v916 = vmul.f32 %v899, %v914
  %v917 = vsel %vm871, 1, 0
  %918 = vset.pattern.permute.xlu0 0
  %919 = vperm.xlu0 %918, %v917
  %v920 = vpop.permute.xlu0 %919
  %vm921 = vcmp.eq.s32.totalorder %v920, 1
  %v922 = vsel %vm921, %v910, %v798
  %v923 = vpack.c.bf16 %v916, %v916
  %vm924 = vmpackc.low %vm921, %vm921
  %v925 = vsel %vm924, %v923, %v801
  %v926 = vsel %vm921, %v916, 0.0
  %928 = vrot.lane.b32.xlu0 %v926, 32
  %v929 = vpop.permute.xlu0 %928
  %s931 = scalar_lea.vmem %s5, 48
  %932 = vst.msk [vmem:[%s931] sm:$0xff] %vm112, %v929
  %vm933 = vcmp.le.s32.totalorder %v93, 6
  %s934 = scalar_lea.vmem %s48, 4
  %v935 = vld [vmem:[%s934] sm:$0xf]
  %v937 = vunpack.c.l.b16 %v863
  %v938 = vpack.c.b16 %v937, %v937
  %939 = vrot.lane.b32.xlu0 %v938, 32
  %v940 = vpop.permute.xlu0 %939
  %v942 = vsel %vm112, %v940, 0
  %944 = vmatpush.bf16.msra.mxu0 0
  %945 = vmatpush.bf16.msra.mxu0 0
  %946 = vmatpush.bf16.msra.mxu0 0
  %947 = vmatpush.bf16.msra.mxu0 0
  %948 = vmatpush.bf16.msra.mxu0 0
  %949 = vmatpush.bf16.msra.mxu0 0
  %950 = vmatpush.bf16.msra.mxu0 %v186
  %951 = vmatpush.bf16.msra.mxu0 %v185
  %952 = vmatmul.bf16.gmra.mxu0 %v942
  %v953 = vpop.f32.mrf.mxu0
  %v954 = vadd.f32 0.0, %v953
  %v955 = vpop.f32.mrf.mxu0
  %956 = vdwg.mxu0
  %v957 = vunpack.c.l.bf16 %v935
  %v958 = vadd.f32 %v957, %v954
  %v959 = vtanh.pop %v958
  %v960 = vmul.f32 %v959, %v84
  %v961 = vadd.f32 %v960, %v85
  %v962 = vmul.f32 %v961, %v860
  %964 = vrot.lane.b32.xlu0 %v961, 64
  %v965 = vpop.permute.xlu0 %964
  %v967 = vmul.f32 %v961, %v965
  %969 = vrot.lane.b32.xlu0 %v967, 32
  %v970 = vpop.permute.xlu0 %969
  %v972 = vadd.f32 %v962, %v970
  %v973 = vtanh.pop %v972
  %975 = vrot.lane.b32.xlu0 %v973, 64
  %v976 = vpop.permute.xlu0 %975
  %v978 = vmul.f32 %v961, %v976
  %v979 = vsel %vm933, 1, 0
  %980 = vset.pattern.permute.xlu0 0
  %981 = vperm.xlu0 %980, %v979
  %v982 = vpop.permute.xlu0 %981
  %vm983 = vcmp.eq.s32.totalorder %v982, 1
  %v984 = vsel %vm983, %v972, %v860
  %v985 = vpack.c.bf16 %v978, %v978
  %vm986 = vmpackc.low %vm983, %vm983
  %v987 = vsel %vm986, %v985, %v863
  %v988 = vsel %vm983, %v978, 0.0
  %990 = vrot.lane.b32.xlu0 %v988, 32
  %v991 = vpop.permute.xlu0 %990
  %s993 = scalar_lea.vmem %s56, 8
  %994 = vst.msk [vmem:[%s993] sm:$0xff] %vm112, %v991
  %vm995 = vcmp.gt.s32.totalorder %v88, 7
  %s996 = scalar_lea.vmem %s1, 28
  %v997 = vld [vmem:[%s996] sm:$0xf]
  %v999 = vunpack.c.l.b16 %v925
  %v1000 = vpack.c.b16 %v999, %v999
  %1001 = vrot.lane.b32.xlu0 %v1000, 32
  %v1002 = vpop.permute.xlu0 %1001
  %v1004 = vsel %vm112, %v1002, 0
  %1006 = vmatpush.bf16.msra.mxu0 0
  %1007 = vmatpush.bf16.msra.mxu0 0
  %1008 = vmatpush.bf16.msra.mxu0 0
  %1009 = vmatpush.bf16.msra.mxu0 0
  %1010 = vmatpush.bf16.msra.mxu0 0
  %1011 = vmatpush.bf16.msra.mxu0 0
  %1012 = vmatpush.bf16.msra.mxu0 %v109
  %1013 = vmatpush.bf16.msra.mxu0 %v108
  %1014 = vmatmul.bf16.gmra.mxu0 %v1004
  %v1015 = vpop.f32.mrf.mxu0
  %v1016 = vadd.f32 0.0, %v1015
  %v1017 = vpop.f32.mrf.mxu0
  %1018 = vdwg.mxu0
  %v1019 = vunpack.c.l.bf16 %v997
  %v1020 = vadd.f32 %v1019, %v1016
  %v1021 = vtanh.pop %v1020
  %v1022 = vmul.f32 %v1021, %v84
  %v1023 = vadd.f32 %v1022, %v85
  %v1024 = vmul.f32 %v1023, %v922
  %1026 = vrot.lane.b32.xlu0 %v1023, 64
  %v1027 = vpop.permute.xlu0 %1026
  %v1029 = vmul.f32 %v1023, %v1027
  %1031 = vrot.lane.b32.xlu0 %v1029, 32
  %v1032 = vpop.permute.xlu0 %1031
  %v1034 = vadd.f32 %v1024, %v1032
  %v1035 = vtanh.pop %v1034
  %1037 = vrot.lane.b32.xlu0 %v1035, 64
  %v1038 = vpop.permute.xlu0 %1037
  %v1040 = vmul.f32 %v1023, %v1038
  %v1041 = vsel %vm995, 1, 0
  %1042 = vset.pattern.permute.xlu0 0
  %1043 = vperm.xlu0 %1042, %v1041
  %v1044 = vpop.permute.xlu0 %1043
  %vm1045 = vcmp.eq.s32.totalorder %v1044, 1
  %v1046 = vsel %vm1045, %v1034, %v922
  %v1047 = vpack.c.bf16 %v1040, %v1040
  %vm1048 = vmpackc.low %vm1045, %vm1045
  %v1049 = vsel %vm1048, %v1047, %v925
  %v1050 = vsel %vm1045, %v1040, 0.0
  %1052 = vrot.lane.b32.xlu0 %v1050, 32
  %v1053 = vpop.permute.xlu0 %1052
  %s1055 = scalar_lea.vmem %s5, 56
  %1056 = vst.msk [vmem:[%s1055] sm:$0xff] %vm112, %v1053
  %vm1057 = vcmp.le.s32.totalorder %v93, 7
  %v1058 = vld [vmem:[%s48] sm:$0xf]
  %v1060 = vunpack.c.l.b16 %v987
  %v1061 = vpack.c.b16 %v1060, %v1060
  %1062 = vrot.lane.b32.xlu0 %v1061, 32
  %v1063 = vpop.permute.xlu0 %1062
  %v1065 = vsel %vm112, %v1063, 0
  %1067 = vmatpush.bf16.msra.mxu0 0
  %1068 = vmatpush.bf16.msra.mxu0 0
  %1069 = vmatpush.bf16.msra.mxu0 0
  %1070 = vmatpush.bf16.msra.mxu0 0
  %1071 = vmatpush.bf16.msra.mxu0 0
  %1072 = vmatpush.bf16.msra.mxu0 0
  %1073 = vmatpush.bf16.msra.mxu0 %v186
  %1074 = vmatpush.bf16.msra.mxu0 %v185
  %1075 = vmatmul.bf16.gmra.mxu0 %v1065
  %v1076 = vpop.f32.mrf.mxu0
  %v1077 = vadd.f32 0.0, %v1076
  %v1078 = vpop.f32.mrf.mxu0
  %1079 = vdwg.mxu0
  %v1080 = vunpack.c.l.bf16 %v1058
  %v1081 = vadd.f32 %v1080, %v1077
  %v1082 = vtanh.pop %v1081
  %v1083 = vmul.f32 %v1082, %v84
  %v1084 = vadd.f32 %v1083, %v85
  %v1085 = vmul.f32 %v1084, %v984
  %1087 = vrot.lane.b32.xlu0 %v1084, 64
  %v1088 = vpop.permute.xlu0 %1087
  %v1090 = vmul.f32 %v1084, %v1088
  %1092 = vrot.lane.b32.xlu0 %v1090, 32
  %v1093 = vpop.permute.xlu0 %1092
  %v1095 = vadd.f32 %v1085, %v1093
  %v1096 = vtanh.pop %v1095
  %1098 = vrot.lane.b32.xlu0 %v1096, 64
  %v1099 = vpop.permute.xlu0 %1098
  %v1101 = vmul.f32 %v1084, %v1099
  %v1102 = vsel %vm1057, 1, 0
  %1103 = vset.pattern.permute.xlu0 0
  %1104 = vperm.xlu0 %1103, %v1102
  %v1105 = vpop.permute.xlu0 %1104
  %vm1106 = vcmp.eq.s32.totalorder %v1105, 1
  %v1107 = vsel %vm1106, %v1095, %v984
  %v1108 = vpack.c.bf16 %v1101, %v1101
  %vm1109 = vmpackc.low %vm1106, %vm1106
  %v1110 = vsel %vm1109, %v1108, %v987
  %v1111 = vsel %vm1106, %v1101, 0.0
  %1113 = vrot.lane.b32.xlu0 %v1111, 32
  %v1114 = vpop.permute.xlu0 %1113
  %1116 = vst.msk [vmem:[%s56] sm:$0xff] %vm112, %v1114
  %1118 = vrot.lane.b32.xlu0 %v1049, 32
  %v1119 = vpop.permute.xlu0 %1118
  %vm1121 = vcmask 257024
  %1122 = vst.msk [vmem:[#allocation2] sm:$0xf] %vm1121, %v1119
  %1124 = vrot.lane.b32.xlu0 %v1046, 96
  %v1125 = vpop.permute.xlu0 %1124
  %1127 = vst.msk [vmem:[#allocation3] sm:$0xff] %vm112, %v1125
  %1129 = vrot.lane.b32.xlu0 %v1110, 32
  %v1130 = vpop.permute.xlu0 %1129
  %1132 = vst.msk [vmem:[#allocation4] sm:$0xf] %vm1121, %v1130
  %1134 = vrot.lane.b32.xlu0 %v1107, 96
  %v1135 = vpop.permute.xlu0 %1134
  %1137 = vst.msk [vmem:[#allocation5] sm:$0xff] %vm112, %v1135
  // Predicated region
  $region26: #{lstm_encoder_forward.2} parent=0 // pred_check
    %p1138 = pneg %p60
  $region27: #{lstm_encoder_forward.2} parent=0 // pred_check_branch
    %1140 = sbr.rel (%p1138) target = $region29
  $region28: #{lstm_encoder_forward.2} parent=0 // pred_region
    %v1141 = vunpack.c.l.bf16 %v1049
    %1143 = vrot.lane.b32.xlu0 %v1141, 32
    %v1144 = vpop.permute.xlu0 %1143
    %1146 = vst.msk [vmem:[%s7] sm:$0xff] %vm112, %v1144
    %v1147 = vunpack.c.l.bf16 %v1110
    %1149 = vrot.lane.b32.xlu0 %v1147, 32
    %v1150 = vpop.permute.xlu0 %1149
    %s1152 = scalar_lea.vmem %s7, 8
    %1153 = vst.msk [vmem:[%s1152] sm:$0xff] %vm112, %v1150
  $region29: #{lstm_encoder_forward.2} parent=0 // pred_fallthru
    _
  %s1154 = ssub.s32 0, 0
  %s1155 = smul.u32 8, %s1154
  %p1156 = scmp.lt.s32.totalorder %s1155, 7
  %s1157 = scalar_select %p1156, %s1155, 7
  %s1158 = smul.addr %s1157, 8
  %s1159 = scalar_lea.vmem %s6, %s1158
  // Predicated region
  $region30: #{lstm_encoder_forward.2} parent=0 // pred_check
    _
  $region31: #{lstm_encoder_forward.2} parent=0 // pred_check_branch
    %1161 = sbr.rel (0) target = $region33
  $region32: #{lstm_encoder_forward.2} parent=0 // pred_region
    _
  $region33: #{lstm_encoder_forward.2} parent=0 // pred_fallthru
    _
  // Predicated region
  $region34: #{lstm_encoder_forward.2} parent=0 // pred_check
    _
  $region35: #{lstm_encoder_forward.2} parent=0 // pred_check_branch
    %1163 = sbr.rel (0) target = $region37
  $region36: #{lstm_encoder_forward.2} parent=0 // pred_region
    %s1164 = ssub.s32 0, 0
    %s1165 = smul.u32 8, %s1164
  $region37: #{lstm_encoder_forward.2} parent=0 // pred_fallthru
    _
  // Predicated region
  $region38: #{lstm_encoder_forward.2} parent=0 // pred_check
    _
  $region39: #{lstm_encoder_forward.2} parent=0 // pred_check_branch
    %1167 = sbr.rel (0) target = $region41
  $region40: #{lstm_encoder_forward.2} parent=0 // pred_region
    _
  $region41: #{lstm_encoder_forward.2} parent=0 // pred_fallthru
    _
  // Predicated region
  $region42: #{lstm_encoder_forward.2} parent=0 // pred_check
    _
  $region43: #{lstm_encoder_forward.2} parent=0 // pred_check_branch
    %1169 = sbr.rel (0) target = $region45
  $region44: #{lstm_encoder_forward.2} parent=0 // pred_region
    _
  $region45: #{lstm_encoder_forward.2} parent=0 // pred_fallthru
    _
  // Predicated region
  $region46: #{lstm_encoder_forward.2} parent=0 // pred_check
    _
  $region47: #{lstm_encoder_forward.2} parent=0 // pred_check_branch
    %1171 = sbr.rel (0) target = $region49
  $region48: #{lstm_encoder_forward.2} parent=0 // pred_region
    %s1172 = ssub.s32 0, 0
    %s1173 = smul.u32 8, %s1172
    %p1174 = scmp.lt.s32.totalorder %s1173, 7
    %s1175 = scalar_select %p1174, %s1173, 7
    %s1176 = smul.addr %s1175, 8
    %s1177 = scalar_lea.vmem %s6, %s1176
  $region49: #{lstm_encoder_forward.2} parent=0 // pred_fallthru
    _
  // Predicated region
  $region50: #{lstm_encoder_forward.2} parent=0 // pred_check
    _
  $region51: #{lstm_encoder_forward.2} parent=0 // pred_check_branch
    %1179 = sbr.rel (0) target = $region53
  $region52: #{lstm_encoder_forward.2} parent=0 // pred_region
    _
  $region53: #{lstm_encoder_forward.2} parent=0 // pred_fallthru
    _

</llo_original>
